<compile_context>
chip_gen: v7x
topology: tpu7x:2x2x1
jax: 0.10.0
libtpu: 0.0.40
codegen_flags: <defaults>
</compile_context>

<pallas_src>
import functools
import math

import jax
import jax.numpy as jnp
from jax.experimental import pallas as pl
from jax.experimental.pallas import tpu as pltpu


_LN_EPS = 1e-5  # PyTorch nn.LayerNorm default


# ------------------------------ utilities ------------------------------

def _round_up(x, m):
    return (x + m - 1) // m * m


def _vmem_limit_bytes():
    """Generation-specific scoped-VMEM cap (conservative on v7x / unknown)."""
    kind = ""
    try:
        kind = jax.devices()[0].device_kind.lower()
    except Exception:
        pass
    if "v5" in kind or "v6" in kind:
        return 64 * 1024 * 1024          # 128 MiB physical on v5e/v6e
    return 40 * 1024 * 1024              # v7x has only 64 MiB physical


_VMEM_LIMIT = _vmem_limit_bytes()


def _cparams(semantics):
    return pltpu.CompilerParams(dimension_semantics=semantics,
                                vmem_limit_bytes=_VMEM_LIMIT)


_BUFFERED_OK = None


def _buffered_supported():
    """Probe-compile a tiny kernel that uses pipeline_mode=pl.Buffered(1)."""
    global _BUFFERED_OK
    if _BUFFERED_OK is not None:
        return _BUFFERED_OK
    ok = False
    try:
        def k(x_ref, o_ref):
            o_ref[...] = x_ref[...] * 2.0
        fn = pl.pallas_call(
            k, grid=(2,),
            in_specs=[pl.BlockSpec((8, 128), lambda i: (0, 0),
                                   pipeline_mode=pl.Buffered(1))],
            out_specs=pl.BlockSpec((8, 128), lambda i: (i, 0)),
            out_shape=jax.ShapeDtypeStruct((16, 128), jnp.float32))
        jax.jit(fn).lower(jnp.zeros((8, 128), jnp.float32)).compile()
        ok = True
    except Exception:
        ok = False
    _BUFFERED_OK = ok
    return ok


def _spec(shape, index_map, invariant=False):
    """BlockSpec; grid-invariant operands get single buffering (saves VMEM)."""
    if invariant and _buffered_supported():
        return pl.BlockSpec(shape, index_map, pipeline_mode=pl.Buffered(1))
    return pl.BlockSpec(shape, index_map)


def _pick_tile(m, cap=256):
    """Largest preferred row tile (256 down to 8) that divides m."""
    for t in (256, 128, 64, 32, 16, 8):
        if t <= cap and m % t == 0:
            return t
    return m


def _pick_hchunk(h):
    """Hidden-dim chunk for the fused MLP (bounds the GELU intermediate)."""
    for c in (512, 256, 128):
        if c < h and h % c == 0:
            return c
    return h


def _choose_seq_pad(seq, batch):
    """Pad seq to a multiple of 8; when cheap, pad further so batch*seq is a
    multiple of 128 so every row-tiled kernel gets full 128/256-row tiles."""
    s8 = _round_up(seq, 8)
    s = s8
    limit = s8 + max(32, s8 // 8)
    while s <= limit:
        if (batch * s) % 128 == 0:
            return s
        s += 8
    return s8


def _layernorm_f32(x, g, b):
    mean = jnp.mean(x, axis=-1, keepdims=True)
    var = jnp.mean((x - mean) ** 2, axis=-1, keepdims=True)
    return (x - mean) * jax.lax.rsqrt(var + _LN_EPS) * g + b


def _gelu_f32(y):
    # exact erf GELU (matches PyTorch nn.GELU default)
    return 0.5 * y * (1.0 + jax.lax.erf(y * (1.0 / math.sqrt(2.0))))


def _bf16_dot(a, b):
    return jnp.dot(a.astype(jnp.bfloat16), b.astype(jnp.bfloat16),
                   preferred_element_type=jnp.float32)


# ----------------------------- Pallas kernels -----------------------------

def _matmul_bias_kernel(x_ref, w_ref, b_ref, o_ref):
    # o = x @ w + b
    y = _bf16_dot(x_ref[...], w_ref[...]) + b_ref[...]
    o_ref[...] = y.astype(o_ref.dtype)


def _ln_matmul_kernel(x_ref, g_ref, b_ref, w_ref, bias_ref, o_ref):
    # o = LayerNorm(x) @ w + bias   (LN in f32, matmul inputs bf16)
    h = _layernorm_f32(x_ref[...].astype(jnp.float32), g_ref[...], b_ref[...])
    y = _bf16_dot(h, w_ref[...]) + bias_ref[...]
    o_ref[...] = y.astype(o_ref.dtype)


def _matmul_bias_residual_kernel(x_ref, w_ref, b_ref, res_ref, o_ref):
    # o = x @ w + b + residual
    y = _bf16_dot(x_ref[...], w_ref[...]) + b_ref[...]
    o_ref[...] = (y + res_ref[...].astype(jnp.float32)).astype(o_ref.dtype)


def _ln_mlp_residual_kernel(x_ref, g_ref, b_ref, w1_ref, b1_ref,
                            w2_ref, b2_ref, o_ref, *, h_chunk):
    # o = x + fc2(gelu(fc1(LayerNorm(x)))), hidden dim processed in chunks so
    # the (tm, H) GELU intermediate never lives whole in VMEM/vregs.
    x = x_ref[...].astype(jnp.float32)
    h = _layernorm_f32(x, g_ref[...], b_ref[...]).astype(jnp.bfloat16)
    hidden = w1_ref.shape[1]
    acc = x + b2_ref[...]                               # residual + fc2 bias
    for c in range(hidden // h_chunk):                  # static chunk loop
        lo = c * h_chunk
        y = jnp.dot(h, w1_ref[:, lo:lo + h_chunk],
                    preferred_element_type=jnp.float32)
        y = y + b1_ref[:, lo:lo + h_chunk]
        y = _gelu_f32(y).astype(jnp.bfloat16)
        acc = acc + jnp.dot(y, w2_ref[lo:lo + h_chunk, :],
                            preferred_element_type=jnp.float32)
    o_ref[...] = acc.astype(o_ref.dtype)


def _layernorm_kernel(x_ref, g_ref, b_ref, o_ref):
    y = _layernorm_f32(x_ref[...].astype(jnp.float32), g_ref[...], b_ref[...])
    o_ref[...] = y.astype(o_ref.dtype)


def _attention_kernel(qkv_ref, o_ref, *, num_heads, head_dim, scale, valid_len):
    # One batch per grid step. qkv_ref: [1, S, 3D] (bf16), o_ref: [1, S, D].
    # Heads are processed one at a time via ref slices (no full f32 [S,3D]
    # materialization, no head-output concat) -> bounded live-value set.
    D = num_heads * head_dim
    S = qkv_ref.shape[1]
    key_idx = jax.lax.broadcasted_iota(jnp.int32, (S, S), 1)
    for h in range(num_heads):                          # static head loop
        lo = h * head_dim
        q = qkv_ref[0, :, lo:lo + head_dim].astype(jnp.bfloat16)
        k = qkv_ref[0, :, D + lo:D + lo + head_dim].astype(jnp.bfloat16)
        v = qkv_ref[0, :, 2 * D + lo:2 * D + lo + head_dim].astype(jnp.bfloat16)
        s = jax.lax.dot_general(q, k, (((1,), (1,)), ((), ())),
                                preferred_element_type=jnp.float32)
        s = s * jnp.float32(scale)
        if valid_len < S:                               # mask padded keys
            s = jnp.where(key_idx < valid_len, s, jnp.float32(-1e30))
        s = s - jnp.max(s, axis=-1, keepdims=True)
        p = jnp.exp(s)
        p = p * pl.reciprocal(jnp.sum(p, axis=-1, keepdims=True), approx=False)
        out = jnp.dot(p.astype(jnp.bfloat16), v,
                      preferred_element_type=jnp.float32)
        o_ref[0, :, lo:lo + head_dim] = out.astype(o_ref.dtype)
    # TODO(synk): for head_dim >= 128, use a (B, heads) grid with lane-aligned
    # per-head BlockSpecs so v7x's two TensorCores split the work.


# ----------------------------- kernel wrappers -----------------------------

def pallas_linear(x, w, b):
    M, K = x.shape
    N = w.shape[1]
    tm = _pick_tile(M)
    return pl.pallas_call(
        _matmul_bias_kernel,
        grid=(M // tm,),
        in_specs=[pl.BlockSpec((tm, K), lambda i: (i, 0)),
                  _spec((K, N), lambda i: (0, 0), invariant=True),
                  _spec((1, N), lambda i: (0, 0), invariant=True)],
        out_specs=pl.BlockSpec((tm, N), lambda i: (i, 0)),
        out_shape=jax.ShapeDtypeStruct((M, N), x.dtype),
        compiler_params=_cparams(("parallel",)),
    )(x, w, b.reshape(1, N))


def pallas_ln_linear(x, g, be, w, bias, out_dtype=None):
    M, K = x.shape
    N = w.shape[1]
    tm = _pick_tile(M)
    out_dtype = out_dtype or x.dtype
    return pl.pallas_call(
        _ln_matmul_kernel,
        grid=(M // tm,),
        in_specs=[pl.BlockSpec((tm, K), lambda i: (i, 0)),
                  _spec((1, K), lambda i: (0, 0), invariant=True),
                  _spec((1, K), lambda i: (0, 0), invariant=True),
                  _spec((K, N), lambda i: (0, 0), invariant=True),
                  _spec((1, N), lambda i: (0, 0), invariant=True)],
        out_specs=pl.BlockSpec((tm, N), lambda i: (i, 0)),
        out_shape=jax.ShapeDtypeStruct((M, N), out_dtype),
        compiler_params=_cparams(("parallel",)),
    )(x, g.reshape(1, K), be.reshape(1, K), w, bias.reshape(1, N))


def pallas_linear_residual(x, w, b, res):
    M, K = x.shape
    N = w.shape[1]
    tm = _pick_tile(M)
    return pl.pallas_call(
        _matmul_bias_residual_kernel,
        grid=(M // tm,),
        in_specs=[pl.BlockSpec((tm, K), lambda i: (i, 0)),
                  _spec((K, N), lambda i: (0, 0), invariant=True),
                  _spec((1, N), lambda i: (0, 0), invariant=True),
                  pl.BlockSpec((tm, N), lambda i: (i, 0))],
        out_specs=pl.BlockSpec((tm, N), lambda i: (i, 0)),
        out_shape=jax.ShapeDtypeStruct((M, N), res.dtype),
        compiler_params=_cparams(("parallel",)),
    )(x, w, b.reshape(1, N), res)


def pallas_ln_mlp_residual(x, g, be, w1, b1, w2, b2):
    M, D = x.shape
    H = w1.shape[1]
    tm = _pick_tile(M, cap=256)
    h_chunk = _pick_hchunk(H)
    kern = functools.partial(_ln_mlp_residual_kernel, h_chunk=h_chunk)
    return pl.pallas_call(
        kern,
        grid=(M // tm,),
        in_specs=[pl.BlockSpec((tm, D), lambda i: (i, 0)),
                  _spec((1, D), lambda i: (0, 0), invariant=True),
                  _spec((1, D), lambda i: (0, 0), invariant=True),
                  _spec((D, H), lambda i: (0, 0), invariant=True),
                  _spec((1, H), lambda i: (0, 0), invariant=True),
                  _spec((H, D), lambda i: (0, 0), invariant=True),
                  _spec((1, D), lambda i: (0, 0), invariant=True)],
        out_specs=pl.BlockSpec((tm, D), lambda i: (i, 0)),
        out_shape=jax.ShapeDtypeStruct((M, D), x.dtype),
        compiler_params=_cparams(("parallel",)),
    )(x, g.reshape(1, D), be.reshape(1, D),
      w1, b1.reshape(1, H), w2, b2.reshape(1, D))


def pallas_layernorm(x, gamma, beta):
    M, D = x.shape
    tm = _pick_tile(M)
    return pl.pallas_call(
        _layernorm_kernel,
        grid=(M // tm,),
        in_specs=[pl.BlockSpec((tm, D), lambda i: (i, 0)),
                  _spec((1, D), lambda i: (0, 0), invariant=True),
                  _spec((1, D), lambda i: (0, 0), invariant=True)],
        out_specs=pl.BlockSpec((tm, D), lambda i: (i, 0)),
        out_shape=jax.ShapeDtypeStruct((M, D), x.dtype),
        compiler_params=_cparams(("parallel",)),
    )(x, gamma.reshape(1, D), beta.reshape(1, D))


def pallas_attention(qkv, num_heads, valid_len):
    """qkv: [B, S_pad, 3D] (bf16) -> multi-head attention output [B, S_pad, D]."""
    B, S, threeD = qkv.shape
    D = threeD // 3
    hd = D // num_heads
    scale = hd ** -0.5
    kern = functools.partial(_attention_kernel, num_heads=num_heads,
                             head_dim=hd, scale=scale, valid_len=valid_len)
    return pl.pallas_call(
        kern,
        grid=(B,),
        in_specs=[pl.BlockSpec((1, S, threeD), lambda b: (b, 0, 0))],
        out_specs=pl.BlockSpec((1, S, D), lambda b: (b, 0, 0)),
        out_shape=jax.ShapeDtypeStruct((B, S, D), qkv.dtype),
        compiler_params=_cparams(("parallel",)),
    )(qkv)


# ----------------------------- model forward -----------------------------

def patch_embed(x, w_flat, b, patch_size):
    """x: [B, C, H, W] NCHW -> tokens [B, N, D] (conv stride=patch as matmul)."""
    B, C, H, W = x.shape
    p = patch_size
    gh, gw = H // p, W // p
    # TODO(synk): fold this NCHW patch gather into the pallas_call index_map DMA.
    patches = x.reshape(B, C, gh, p, gw, p).transpose(0, 2, 4, 1, 3, 5)
    patches = patches.reshape(B * gh * gw, C * p * p)
    tokens = pallas_linear(patches, w_flat, b)                 # [B*N, D] f32
    return tokens.reshape(B, gh * gw, -1)


def transformer_block(x2, p, *, num_heads, B, S_pad, valid_len):
    """x2: [B*S_pad, D] f32 residual stream -> [B*S_pad, D] f32."""
    D = x2.shape[-1]

    # attention branch: LN1+QKV fused (bf16 out), per-batch attention (bf16 out),
    # proj + residual fused (f32 out).
    qkv = pallas_ln_linear(x2, p["ln1_g"], p["ln1_b"], p["qkv_w"], p["qkv_b"],
                           out_dtype=jnp.bfloat16)             # [B*S, 3D] bf16
    attn = pallas_attention(qkv.reshape(B, S_pad, 3 * D), num_heads, valid_len)
    attn = attn.reshape(B * S_pad, D)                          # bf16
    x2 = pallas_linear_residual(attn, p["proj_w"], p["proj_b"], x2)

    # MLP branch: LN2 + fc1 + GELU + fc2 + residual in one kernel (H chunked).
    x2 = pallas_ln_mlp_residual(x2, p["ln2_g"], p["ln2_b"],
                                p["fc1_w"], p["fc1_b"],
                                p["fc2_w"], p["fc2_b"])
    return x2


def vit_forward(x, params, *, patch_size, num_heads):
    B = x.shape[0]
    tokens = patch_embed(x, params["patch_w"], params["patch_b"], patch_size)
    D = tokens.shape[-1]
    cls = jnp.broadcast_to(params["cls_token"].astype(tokens.dtype), (B, 1, D))
    tokens = jnp.concatenate([cls, tokens], axis=1)            # [B, S, D]
    tokens = tokens + params["pos_embed"]
    S = tokens.shape[1]

    # Pad sequence once: multiple of 8 for (8,128) tiling, and (when cheap) so
    # B*S_pad is a multiple of 128 -> full 128/256 row tiles for every linear
    # kernel. Attention masks padded keys; padding is stripped at the end.
    S_pad = _choose_seq_pad(S, B)
    if S_pad != S:
        tokens = jnp.pad(tokens, ((0, 0), (0, S_pad - S), (0, 0)))

    x2 = tokens.reshape(B * S_pad, D)
    for blk_params in params["blocks"]:
        x2 = transformer_block(x2, blk_params, num_heads=num_heads,
                               B=B, S_pad=S_pad, valid_len=S)
    out = pallas_layernorm(x2, params["norm_g"], params["norm_b"])
    return out.reshape(B, S_pad, D)[:, :S, :]


# ----------------------------- parameter init -----------------------------

def init_params(key, *, img_size, patch_size, in_chans, embed_dim, depth,
                num_heads, mlp_ratio):
    num_patches = (img_size // patch_size) ** 2
    hidden = int(embed_dim * mlp_ratio)
    kdim = in_chans * patch_size * patch_size

    def nrm(k, shape, std=0.02, dtype=jnp.float32):
        return (std * jax.random.normal(k, shape)).astype(dtype)

    keys = jax.random.split(key, 4 + depth)
    params = {
        # GEMM weights live in bf16 (HBM BW + VMEM); everything else f32.
        "patch_w": nrm(keys[0], (kdim, embed_dim), dtype=jnp.bfloat16),
        "patch_b": jnp.zeros((embed_dim,), jnp.float32),
        "cls_token": nrm(keys[1], (1, 1, embed_dim)),
        "pos_embed": nrm(keys[2], (1, num_patches + 1, embed_dim)),
        "norm_g": jnp.ones((embed_dim,), jnp.float32),
        "norm_b": jnp.zeros((embed_dim,), jnp.float32),
        "blocks": [],
    }
    for i in range(depth):
        bk = jax.random.split(keys[4 + i], 4)
        params["blocks"].append({
            "ln1_g": jnp.ones((embed_dim,), jnp.float32),
            "ln1_b": jnp.zeros((embed_dim,), jnp.float32),
            "qkv_w": nrm(bk[0], (embed_dim, 3 * embed_dim), dtype=jnp.bfloat16),
            "qkv_b": jnp.zeros((3 * embed_dim,), jnp.float32),
            "proj_w": nrm(bk[1], (embed_dim, embed_dim), dtype=jnp.bfloat16),
            "proj_b": jnp.zeros((embed_dim,), jnp.float32),
            "ln2_g": jnp.ones((embed_dim,), jnp.float32),
            "ln2_b": jnp.zeros((embed_dim,), jnp.float32),
            "fc1_w": nrm(bk[2], (embed_dim, hidden), dtype=jnp.bfloat16),
            "fc1_b": jnp.zeros((hidden,), jnp.float32),
            "fc2_w": nrm(bk[3], (hidden, embed_dim), dtype=jnp.bfloat16),
            "fc2_b": jnp.zeros((embed_dim,), jnp.float32),
        })
    return params


# ----------------------------- main -----------------------------

if __name__ == "__main__":
    # small configuration consistent with the module's structure
    IMG, PATCH, CIN = 16, 8, 3
    EMBED, DEPTH, HEADS, MLP_RATIO = 32, 2, 4, 4.0

    key = jax.random.PRNGKey(0)
    pkey, xkey = jax.random.split(key)

    params = init_params(pkey, img_size=IMG, patch_size=PATCH, in_chans=CIN,
                         embed_dim=EMBED, depth=DEPTH, num_heads=HEADS,
                         mlp_ratio=MLP_RATIO)

    # NCHW input, like the PyTorch module
    x = jax.random.normal(xkey, (2, CIN, IMG, IMG), dtype=jnp.float32)

    _buffered_supported()  # run the Buffered(1) probe outside the jit trace
    fwd = jax.jit(functools.partial(vit_forward, patch_size=PATCH,
                                    num_heads=HEADS))
    out = jax.block_until_ready(fwd(x, params))

    expected_seq = (IMG // PATCH) ** 2 + 1
    assert out.shape == (2, expected_seq, EMBED), out.shape
    assert bool(jnp.all(jnp.isfinite(out)))
    print("KERNEL_OK")
</pallas_src>

<mosaic_0001>
module attributes {stable_mosaic.version = 11 : i64} {
  func.func @_matmul_bias_kernel(%arg0: i32, %arg1: memref<8x192xf32, #tpu.memory_space<vmem>>, %arg2: memref<192x32xbf16, #tpu.memory_space<vmem>>, %arg3: memref<1x32xf32, #tpu.memory_space<vmem>>, %arg4: memref<8x32xf32, #tpu.memory_space<vmem>>) attributes {dimension_semantics = [#tpu.dimension_semantics<parallel>], iteration_bounds = array<i64: 1>, scalar_prefetch = 0 : i64, scratch_operands = 0 : i64, tpu.core_type = #tpu.core_type<tc>, window_params = [{transform_indices = @transform_0, window_bounds = array<i64: 8, 192>}, {pipeline_mode = #tpu.pipeline_mode<synchronous>, transform_indices = @transform_1, window_bounds = array<i64: 192, 32>}, {pipeline_mode = #tpu.pipeline_mode<synchronous>, transform_indices = @transform_2, window_bounds = array<i64: 1, 32>}, {transform_indices = @transform_3, window_bounds = array<i64: 8, 32>}]} {
    %c0 = arith.constant 0 : index
    %c0_0 = arith.constant 0 : index
    %0 = vector.load %arg1[%c0, %c0_0] : memref<8x192xf32, #tpu.memory_space<vmem>>, vector<8x192xf32>
    %c0_1 = arith.constant 0 : index
    %c0_2 = arith.constant 0 : index
    %1 = vector.load %arg2[%c0_1, %c0_2] : memref<192x32xbf16, #tpu.memory_space<vmem>>, vector<192x32xbf16>
    %2 = arith.truncf %0 : vector<8x192xf32> to vector<8x192xbf16>
    %cst = arith.constant dense<0.000000e+00> : vector<8x32xf32>
    %3 = tpu.matmul %2, %1, %cst {dimension_numbers = #tpu.dot_dimension_numbers<[1], [0], [0], [1], [0, 0, 1, 1], [], []>} : vector<8x192xbf16>, vector<192x32xbf16>, vector<8x32xf32> -> vector<8x32xf32>
    %c0_3 = arith.constant 0 : index
    %c0_4 = arith.constant 0 : index
    %4 = vector.load %arg3[%c0_3, %c0_4] : memref<1x32xf32, #tpu.memory_space<vmem>>, vector<1x32xf32>
    %5 = vector.broadcast %4 : vector<1x32xf32> to vector<8x32xf32>
    %6 = arith.addf %3, %5 : vector<8x32xf32>
    %c0_5 = arith.constant 0 : index
    %c0_6 = arith.constant 0 : index
    %7 = vector.load %arg4[%c0_5, %c0_6] : memref<8x32xf32, #tpu.memory_space<vmem>>, vector<8x32xf32>
    tpu.vector_store %arg4[%c0_5, %c0_6], %6 {strides = array<i32>} : memref<8x32xf32, #tpu.memory_space<vmem>>, vector<8x32xf32>,
    return
  }
  func.func @transform_0(%arg0: i32) -> (i32, i32) {
    %c0_i32 = arith.constant 0 : i32
    %c0_i32_0 = arith.constant 0 : i32
    return %arg0, %c0_i32 : i32, i32
  }
  func.func @transform_1(%arg0: i32) -> (i32, i32) {
    %c0_i32 = arith.constant 0 : i32
    %c0_i32_0 = arith.constant 0 : i32
    %c0_i32_1 = arith.constant 0 : i32
    return %c0_i32, %c0_i32_0 : i32, i32
  }
  func.func @transform_2(%arg0: i32) -> (i32, i32) {
    %c0_i32 = arith.constant 0 : i32
    %c0_i32_0 = arith.constant 0 : i32
    %c0_i32_1 = arith.constant 0 : i32
    return %c0_i32, %c0_i32_0 : i32, i32
  }
  func.func @transform_3(%arg0: i32) -> (i32, i32) {
    %c0_i32 = arith.constant 0 : i32
    %c0_i32_0 = arith.constant 0 : i32
    return %arg0, %c0_i32 : i32, i32
  }
}

module attributes {stable_mosaic.version = 11 : i64} {
  func.func @_ln_matmul_kernel(%arg0: i32, %arg1: memref<16x32xf32, #tpu.memory_space<vmem>>, %arg2: memref<1x32xf32, #tpu.memory_space<vmem>>, %arg3: memref<1x32xf32, #tpu.memory_space<vmem>>, %arg4: memref<32x96xbf16, #tpu.memory_space<vmem>>, %arg5: memref<1x96xf32, #tpu.memory_space<vmem>>, %arg6: memref<16x96xbf16, #tpu.memory_space<vmem>>) attributes {dimension_semantics = [#tpu.dimension_semantics<parallel>], iteration_bounds = array<i64: 1>, scalar_prefetch = 0 : i64, scratch_operands = 0 : i64, tpu.core_type = #tpu.core_type<tc>, window_params = [{transform_indices = @transform_0, window_bounds = array<i64: 16, 32>}, {pipeline_mode = #tpu.pipeline_mode<synchronous>, transform_indices = @transform_1, window_bounds = array<i64: 1, 32>}, {pipeline_mode = #tpu.pipeline_mode<synchronous>, transform_indices = @transform_2, window_bounds = array<i64: 1, 32>}, {pipeline_mode = #tpu.pipeline_mode<synchronous>, transform_indices = @transform_3, window_bounds = array<i64: 32, 96>}, {pipeline_mode = #tpu.pipeline_mode<synchronous>, transform_indices = @transform_4, window_bounds = array<i64: 1, 96>}, {transform_indices = @transform_5, window_bounds = array<i64: 16, 96>}]} {
    %c0 = arith.constant 0 : index
    %c0_0 = arith.constant 0 : index
    %0 = vector.load %arg1[%c0, %c0_0] : memref<16x32xf32, #tpu.memory_space<vmem>>, vector<16x32xf32>
    %c0_1 = arith.constant 0 : index
    %c0_2 = arith.constant 0 : index
    %1 = vector.load %arg2[%c0_1, %c0_2] : memref<1x32xf32, #tpu.memory_space<vmem>>, vector<1x32xf32>
    %c0_3 = arith.constant 0 : index
    %c0_4 = arith.constant 0 : index
    %2 = vector.load %arg3[%c0_3, %c0_4] : memref<1x32xf32, #tpu.memory_space<vmem>>, vector<1x32xf32>
    %cst = arith.constant dense<0.000000e+00> : vector<16xf32>
    %3 = vector.multi_reduction <add>, %0, %cst [1] : vector<16x32xf32> to vector<16xf32>
    %4 = vector.shape_cast %3 : vector<16xf32> to vector<16x1xf32>
    %cst_5 = arith.constant 3.200000e+01 : f32
    %5 = vector.broadcast %cst_5 : f32 to vector<16x1xf32>
    %6 = arith.divf %4, %5 : vector<16x1xf32>
    %7 = vector.broadcast %6 : vector<16x1xf32> to vector<16x32xf32>
    %8 = arith.subf %0, %7 : vector<16x32xf32>
    %9 = arith.mulf %8, %8 : vector<16x32xf32>
    %cst_6 = arith.constant dense<0.000000e+00> : vector<16xf32>
    %10 = vector.multi_reduction <add>, %9, %cst_6 [1] : vector<16x32xf32> to vector<16xf32>
    %11 = vector.shape_cast %10 : vector<16xf32> to vector<16x1xf32>
    %cst_7 = arith.constant 3.200000e+01 : f32
    %12 = vector.broadcast %cst_7 : f32 to vector<16x1xf32>
    %13 = arith.divf %11, %12 : vector<16x1xf32>
    %14 = vector.broadcast %6 : vector<16x1xf32> to vector<16x32xf32>
    %15 = arith.subf %0, %14 : vector<16x32xf32>
    %cst_8 = arith.constant 9.99999974E-6 : f32
    %16 = vector.broadcast %cst_8 : f32 to vector<16x1xf32>
    %17 = arith.addf %13, %16 : vector<16x1xf32>
    %18 = math.rsqrt %17 : vector<16x1xf32>
    %19 = vector.broadcast %18 : vector<16x1xf32> to vector<16x32xf32>
    %20 = arith.mulf %15, %19 : vector<16x32xf32>
    %21 = vector.broadcast %1 : vector<1x32xf32> to vector<16x32xf32>
    %22 = arith.mulf %20, %21 : vector<16x32xf32>
    %23 = vector.broadcast %2 : vector<1x32xf32> to vector<16x32xf32>
    %24 = arith.addf %22, %23 : vector<16x32xf32>
    %c0_9 = arith.constant 0 : index
    %c0_10 = arith.constant 0 : index
    %25 = vector.load %arg4[%c0_9, %c0_10] : memref<32x96xbf16, #tpu.memory_space<vmem>>, vector<32x96xbf16>
    %26 = arith.truncf %24 : vector<16x32xf32> to vector<16x32xbf16>
    %cst_11 = arith.constant dense<0.000000e+00> : vector<16x96xf32>
    %27 = tpu.matmul %26, %25, %cst_11 {dimension_numbers = #tpu.dot_dimension_numbers<[1], [0], [0], [1], [0, 0, 1, 1], [], []>} : vector<16x32xbf16>, vector<32x96xbf16>, vector<16x96xf32> -> vector<16x96xf32>
    %c0_12 = arith.constant 0 : index
    %c0_13 = arith.constant 0 : index
    %28 = vector.load %arg5[%c0_12, %c0_13] : memref<1x96xf32, #tpu.memory_space<vmem>>, vector<1x96xf32>
    %29 = vector.broadcast %28 : vector<1x96xf32> to vector<16x96xf32>
    %30 = arith.addf %27, %29 : vector<16x96xf32>
    %31 = arith.truncf %30 : vector<16x96xf32> to vector<16x96xbf16>
    %c0_14 = arith.constant 0 : index
    %c0_15 = arith.constant 0 : index
    %32 = vector.load %arg6[%c0_14, %c0_15] : memref<16x96xbf16, #tpu.memory_space<vmem>>, vector<16x96xbf16>
    tpu.vector_store %arg6[%c0_14, %c0_15], %31 {strides = array<i32>} : memref<16x96xbf16, #tpu.memory_space<vmem>>, vector<16x96xbf16>,
    return
  }
  func.func @transform_0(%arg0: i32) -> (i32, i32) {
    %c0_i32 = arith.constant 0 : i32
    %c0_i32_0 = arith.constant 0 : i32
    return %arg0, %c0_i32 : i32, i32
  }
  func.func @transform_1(%arg0: i32) -> (i32, i32) {
    %c0_i32 = arith.constant 0 : i32
    %c0_i32_0 = arith.constant 0 : i32
    %c0_i32_1 = arith.constant 0 : i32
    return %c0_i32, %c0_i32_0 : i32, i32
  }
  func.func @transform_2(%arg0: i32) -> (i32, i32) {
    %c0_i32 = arith.constant 0 : i32
    %c0_i32_0 = arith.constant 0 : i32
    %c0_i32_1 = arith.constant 0 : i32
    return %c0_i32, %c0_i32_0 : i32, i32
  }
  func.func @transform_3(%arg0: i32) -> (i32, i32) {
    %c0_i32 = arith.constant 0 : i32
    %c0_i32_0 = arith.constant 0 : i32
    %c0_i32_1 = arith.constant 0 : i32
    return %c0_i32, %c0_i32_0 : i32, i32
  }
  func.func @transform_4(%arg0: i32) -> (i32, i32) {
    %c0_i32 = arith.constant 0 : i32
    %c0_i32_0 = arith.constant 0 : i32
    %c0_i32_1 = arith.constant 0 : i32
    return %c0_i32, %c0_i32_0 : i32, i32
  }
  func.func @transform_5(%arg0: i32) -> (i32, i32) {
    %c0_i32 = arith.constant 0 : i32
    %c0_i32_0 = arith.constant 0 : i32
    return %arg0, %c0_i32 : i32, i32
  }
}

module attributes {stable_mosaic.version = 11 : i64} {
  func.func @_matmul_bias_residual_kernel(%arg0: i32, %arg1: memref<16x32xbf16, #tpu.memory_space<vmem>>, %arg2: memref<32x32xbf16, #tpu.memory_space<vmem>>, %arg3: memref<1x32xf32, #tpu.memory_space<vmem>>, %arg4: memref<16x32xf32, #tpu.memory_space<vmem>>, %arg5: memref<16x32xf32, #tpu.memory_space<vmem>>) attributes {dimension_semantics = [#tpu.dimension_semantics<parallel>], iteration_bounds = array<i64: 1>, scalar_prefetch = 0 : i64, scratch_operands = 0 : i64, tpu.core_type = #tpu.core_type<tc>, window_params = [{transform_indices = @transform_0, window_bounds = array<i64: 16, 32>}, {pipeline_mode = #tpu.pipeline_mode<synchronous>, transform_indices = @transform_1, window_bounds = array<i64: 32, 32>}, {pipeline_mode = #tpu.pipeline_mode<synchronous>, transform_indices = @transform_2, window_bounds = array<i64: 1, 32>}, {transform_indices = @transform_3, window_bounds = array<i64: 16, 32>}, {transform_indices = @transform_4, window_bounds = array<i64: 16, 32>}]} {
    %c0 = arith.constant 0 : index
    %c0_0 = arith.constant 0 : index
    %0 = vector.load %arg1[%c0, %c0_0] : memref<16x32xbf16, #tpu.memory_space<vmem>>, vector<16x32xbf16>
    %c0_1 = arith.constant 0 : index
    %c0_2 = arith.constant 0 : index
    %1 = vector.load %arg2[%c0_1, %c0_2] : memref<32x32xbf16, #tpu.memory_space<vmem>>, vector<32x32xbf16>
    %cst = arith.constant dense<0.000000e+00> : vector<16x32xf32>
    %2 = tpu.matmul %0, %1, %cst {dimension_numbers = #tpu.dot_dimension_numbers<[1], [0], [0], [1], [0, 0, 1, 1], [], []>} : vector<16x32xbf16>, vector<32x32xbf16>, vector<16x32xf32> -> vector<16x32xf32>
    %c0_3 = arith.constant 0 : index
    %c0_4 = arith.constant 0 : index
    %3 = vector.load %arg3[%c0_3, %c0_4] : memref<1x32xf32, #tpu.memory_space<vmem>>, vector<1x32xf32>
    %4 = vector.broadcast %3 : vector<1x32xf32> to vector<16x32xf32>
    %5 = arith.addf %2, %4 : vector<16x32xf32>
    %c0_5 = arith.constant 0 : index
    %c0_6 = arith.constant 0 : index
    %6 = vector.load %arg4[%c0_5, %c0_6] : memref<16x32xf32, #tpu.memory_space<vmem>>, vector<16x32xf32>
    %7 = arith.addf %5, %6 : vector<16x32xf32>
    %c0_7 = arith.constant 0 : index
    %c0_8 = arith.constant 0 : index
    %8 = vector.load %arg5[%c0_7, %c0_8] : memref<16x32xf32, #tpu.memory_space<vmem>>, vector<16x32xf32>
    tpu.vector_store %arg5[%c0_7, %c0_8], %7 {strides = array<i32>} : memref<16x32xf32, #tpu.memory_space<vmem>>, vector<16x32xf32>,
    return
  }
  func.func @transform_0(%arg0: i32) -> (i32, i32) {
    %c0_i32 = arith.constant 0 : i32
    %c0_i32_0 = arith.constant 0 : i32
    return %arg0, %c0_i32 : i32, i32
  }
  func.func @transform_1(%arg0: i32) -> (i32, i32) {
    %c0_i32 = arith.constant 0 : i32
    %c0_i32_0 = arith.constant 0 : i32
    %c0_i32_1 = arith.constant 0 : i32
    return %c0_i32, %c0_i32_0 : i32, i32
  }
  func.func @transform_2(%arg0: i32) -> (i32, i32) {
    %c0_i32 = arith.constant 0 : i32
    %c0_i32_0 = arith.constant 0 : i32
    %c0_i32_1 = arith.constant 0 : i32
    return %c0_i32, %c0_i32_0 : i32, i32
  }
  func.func @transform_3(%arg0: i32) -> (i32, i32) {
    %c0_i32 = arith.constant 0 : i32
    %c0_i32_0 = arith.constant 0 : i32
    return %arg0, %c0_i32 : i32, i32
  }
  func.func @transform_4(%arg0: i32) -> (i32, i32) {
    %c0_i32 = arith.constant 0 : i32
    %c0_i32_0 = arith.constant 0 : i32
    return %arg0, %c0_i32 : i32, i32
  }
}

module attributes {stable_mosaic.version = 11 : i64} {
  func.func @_attention_kernel(%arg0: i32, %arg1: memref<1x8x96xbf16, #tpu.memory_space<vmem>>, %arg2: memref<1x8x32xbf16, #tpu.memory_space<vmem>>) attributes {dimension_semantics = [#tpu.dimension_semantics<parallel>], iteration_bounds = array<i64: 2>, scalar_prefetch = 0 : i64, scratch_operands = 0 : i64, tpu.core_type = #tpu.core_type<tc>, window_params = [{transform_indices = @transform_0, window_bounds = array<i64: 1, 8, 96>}, {transform_indices = @transform_1, window_bounds = array<i64: 1, 8, 32>}]} {
    %0 = tpu.iota {dimensions = array<i32: 1>} : vector<8x8xi32>
    %c0 = arith.constant 0 : index
    %c0_0 = arith.constant 0 : index
    %c0_1 = arith.constant 0 : index
    %1 = vector.load %arg1[%c0, %c0_0, %c0_1] : memref<1x8x96xbf16, #tpu.memory_space<vmem>>, vector<1x8x8xbf16>
    %2 = vector.shape_cast %1 : vector<1x8x8xbf16> to vector<8x8xbf16>
    %c0_2 = arith.constant 0 : index
    %c0_3 = arith.constant 0 : index
    %c32 = arith.constant 32 : index
    %3 = vector.load %arg1[%c0_2, %c0_3, %c32] : memref<1x8x96xbf16, #tpu.memory_space<vmem>>, vector<1x8x8xbf16>
    %4 = vector.shape_cast %3 : vector<1x8x8xbf16> to vector<8x8xbf16>
    %c0_4 = arith.constant 0 : index
    %c0_5 = arith.constant 0 : index
    %c64 = arith.constant 64 : index
    %5 = vector.load %arg1[%c0_4, %c0_5, %c64] : memref<1x8x96xbf16, #tpu.memory_space<vmem>>, vector<1x8x8xbf16>
    %6 = vector.shape_cast %5 : vector<1x8x8xbf16> to vector<8x8xbf16>
    %cst = arith.constant dense<0.000000e+00> : vector<8x8xf32>
    %7 = tpu.matmul %2, %4, %cst {dimension_numbers = #tpu.dot_dimension_numbers<[1], [1], [0], [0], [0, 0, 1, 0], [], []>} : vector<8x8xbf16>, vector<8x8xbf16>, vector<8x8xf32> -> vector<8x8xf32>
    %cst_6 = arith.constant 0.353553385 : f32
    %8 = vector.broadcast %cst_6 : f32 to vector<8x8xf32>
    %9 = arith.mulf %7, %8 : vector<8x8xf32>
    %c5_i32 = arith.constant 5 : i32
    %10 = vector.broadcast %c5_i32 : i32 to vector<8x8xi32>
    %11 = arith.cmpi slt, %0, %10 : vector<8x8xi32>
    %cst_7 = arith.constant -1.000000e+30 : f32
    %12 = vector.broadcast %cst_7 : f32 to vector<8x8xf32>
    %13 = arith.select %11, %9, %12 : vector<8x8xi1>, vector<8x8xf32>
    %cst_8 = arith.constant dense<0xFF800000> : vector<8xf32>
    %14 = vector.multi_reduction <maximumf>, %13, %cst_8 [1] : vector<8x8xf32> to vector<8xf32>
    %15 = vector.shape_cast %14 : vector<8xf32> to vector<8x1xf32>
    %16 = vector.broadcast %15 : vector<8x1xf32> to vector<8x8xf32>
    %17 = arith.subf %13, %16 : vector<8x8xf32>
    %18 = math.exp %17 : vector<8x8xf32>
    %cst_9 = arith.constant dense<0.000000e+00> : vector<8xf32>
    %19 = vector.multi_reduction <add>, %18, %cst_9 [1] : vector<8x8xf32> to vector<8xf32>
    %20 = vector.shape_cast %19 : vector<8xf32> to vector<8x1xf32>
    %21 = tpu.reciprocal %20 : vector<8x1xf32> -> vector<8x1xf32>
    %22 = vector.broadcast %21 : vector<8x1xf32> to vector<8x8xf32>
    %23 = arith.mulf %18, %22 : vector<8x8xf32>
    %24 = arith.truncf %23 : vector<8x8xf32> to vector<8x8xbf16>
    %cst_10 = arith.constant dense<0.000000e+00> : vector<8x8xf32>
    %25 = tpu.matmul %24, %6, %cst_10 {dimension_numbers = #tpu.dot_dimension_numbers<[1], [0], [0], [1], [0, 0, 1, 1], [], []>} : vector<8x8xbf16>, vector<8x8xbf16>, vector<8x8xf32> -> vector<8x8xf32>
    %26 = arith.truncf %25 : vector<8x8xf32> to vector<8x8xbf16>
    %c0_11 = arith.constant 0 : index
    %c0_12 = arith.constant 0 : index
    %c0_13 = arith.constant 0 : index
    %27 = vector.load %arg2[%c0_11, %c0_12, %c0_13] : memref<1x8x32xbf16, #tpu.memory_space<vmem>>, vector<1x8x8xbf16>
    %28 = vector.shape_cast %27 : vector<1x8x8xbf16> to vector<8x8xbf16>
    %29 = vector.shape_cast %26 : vector<8x8xbf16> to vector<1x8x8xbf16>
    tpu.vector_store %arg2[%c0_11, %c0_12, %c0_13], %29 {strides = array<i32>} : memref<1x8x32xbf16, #tpu.memory_space<vmem>>, vector<1x8x8xbf16>,
    %c0_14 = arith.constant 0 : index
    %c0_15 = arith.constant 0 : index
    %c8 = arith.constant 8 : index
    %30 = vector.load %arg1[%c0_14, %c0_15, %c8] : memref<1x8x96xbf16, #tpu.memory_space<vmem>>, vector<1x8x8xbf16>
    %31 = vector.shape_cast %30 : vector<1x8x8xbf16> to vector<8x8xbf16>
    %c0_16 = arith.constant 0 : index
    %c0_17 = arith.constant 0 : index
    %c40 = arith.constant 40 : index
    %32 = vector.load %arg1[%c0_16, %c0_17, %c40] : memref<1x8x96xbf16, #tpu.memory_space<vmem>>, vector<1x8x8xbf16>
    %33 = vector.shape_cast %32 : vector<1x8x8xbf16> to vector<8x8xbf16>
    %c0_18 = arith.constant 0 : index
    %c0_19 = arith.constant 0 : index
    %c72 = arith.constant 72 : index
    %34 = vector.load %arg1[%c0_18, %c0_19, %c72] : memref<1x8x96xbf16, #tpu.memory_space<vmem>>, vector<1x8x8xbf16>
    %35 = vector.shape_cast %34 : vector<1x8x8xbf16> to vector<8x8xbf16>
    %cst_20 = arith.constant dense<0.000000e+00> : vector<8x8xf32>
    %36 = tpu.matmul %31, %33, %cst_20 {dimension_numbers = #tpu.dot_dimension_numbers<[1], [1], [0], [0], [0, 0, 1, 0], [], []>} : vector<8x8xbf16>, vector<8x8xbf16>, vector<8x8xf32> -> vector<8x8xf32>
    %cst_21 = arith.constant 0.353553385 : f32
    %37 = vector.broadcast %cst_21 : f32 to vector<8x8xf32>
    %38 = arith.mulf %36, %37 : vector<8x8xf32>
    %c5_i32_22 = arith.constant 5 : i32
    %39 = vector.broadcast %c5_i32_22 : i32 to vector<8x8xi32>
    %40 = arith.cmpi slt, %0, %39 : vector<8x8xi32>
    %cst_23 = arith.constant -1.000000e+30 : f32
    %41 = vector.broadcast %cst_23 : f32 to vector<8x8xf32>
    %42 = arith.select %40, %38, %41 : vector<8x8xi1>, vector<8x8xf32>
    %cst_24 = arith.constant dense<0xFF800000> : vector<8xf32>
    %43 = vector.multi_reduction <maximumf>, %42, %cst_24 [1] : vector<8x8xf32> to vector<8xf32>
    %44 = vector.shape_cast %43 : vector<8xf32> to vector<8x1xf32>
    %45 = vector.broadcast %44 : vector<8x1xf32> to vector<8x8xf32>
    %46 = arith.subf %42, %45 : vector<8x8xf32>
    %47 = math.exp %46 : vector<8x8xf32>
    %cst_25 = arith.constant dense<0.000000e+00> : vector<8xf32>
    %48 = vector.multi_reduction <add>, %47, %cst_25 [1] : vector<8x8xf32> to vector<8xf32>
    %49 = vector.shape_cast %48 : vector<8xf32> to vector<8x1xf32>
    %50 = tpu.reciprocal %49 : vector<8x1xf32> -> vector<8x1xf32>
    %51 = vector.broadcast %50 : vector<8x1xf32> to vector<8x8xf32>
    %52 = arith.mulf %47, %51 : vector<8x8xf32>
    %53 = arith.truncf %52 : vector<8x8xf32> to vector<8x8xbf16>
    %cst_26 = arith.constant dense<0.000000e+00> : vector<8x8xf32>
    %54 = tpu.matmul %53, %35, %cst_26 {dimension_numbers = #tpu.dot_dimension_numbers<[1], [0], [0], [1], [0, 0, 1, 1], [], []>} : vector<8x8xbf16>, vector<8x8xbf16>, vector<8x8xf32> -> vector<8x8xf32>
    %55 = arith.truncf %54 : vector<8x8xf32> to vector<8x8xbf16>
    %c0_27 = arith.constant 0 : index
    %c0_28 = arith.constant 0 : index
    %c8_29 = arith.constant 8 : index
    %56 = vector.load %arg2[%c0_27, %c0_28, %c8_29] : memref<1x8x32xbf16, #tpu.memory_space<vmem>>, vector<1x8x8xbf16>
    %57 = vector.shape_cast %56 : vector<1x8x8xbf16> to vector<8x8xbf16>
    %58 = vector.shape_cast %55 : vector<8x8xbf16> to vector<1x8x8xbf16>
    tpu.vector_store %arg2[%c0_27, %c0_28, %c8_29], %58 {strides = array<i32>} : memref<1x8x32xbf16, #tpu.memory_space<vmem>>, vector<1x8x8xbf16>,
    %c0_30 = arith.constant 0 : index
    %c0_31 = arith.constant 0 : index
    %c16 = arith.constant 16 : index
    %59 = vector.load %arg1[%c0_30, %c0_31, %c16] : memref<1x8x96xbf16, #tpu.memory_space<vmem>>, vector<1x8x8xbf16>
    %60 = vector.shape_cast %59 : vector<1x8x8xbf16> to vector<8x8xbf16>
    %c0_32 = arith.constant 0 : index
    %c0_33 = arith.constant 0 : index
    %c48 = arith.constant 48 : index
    %61 = vector.load %arg1[%c0_32, %c0_33, %c48] : memref<1x8x96xbf16, #tpu.memory_space<vmem>>, vector<1x8x8xbf16>
    %62 = vector.shape_cast %61 : vector<1x8x8xbf16> to vector<8x8xbf16>
    %c0_34 = arith.constant 0 : index
    %c0_35 = arith.constant 0 : index
    %c80 = arith.constant 80 : index
    %63 = vector.load %arg1[%c0_34, %c0_35, %c80] : memref<1x8x96xbf16, #tpu.memory_space<vmem>>, vector<1x8x8xbf16>
    %64 = vector.shape_cast %63 : vector<1x8x8xbf16> to vector<8x8xbf16>
    %cst_36 = arith.constant dense<0.000000e+00> : vector<8x8xf32>
    %65 = tpu.matmul %60, %62, %cst_36 {dimension_numbers = #tpu.dot_dimension_numbers<[1], [1], [0], [0], [0, 0, 1, 0], [], []>} : vector<8x8xbf16>, vector<8x8xbf16>, vector<8x8xf32> -> vector<8x8xf32>
    %cst_37 = arith.constant 0.353553385 : f32
    %66 = vector.broadcast %cst_37 : f32 to vector<8x8xf32>
    %67 = arith.mulf %65, %66 : vector<8x8xf32>
    %c5_i32_38 = arith.constant 5 : i32
    %68 = vector.broadcast %c5_i32_38 : i32 to vector<8x8xi32>
    %69 = arith.cmpi slt, %0, %68 : vector<8x8xi32>
    %cst_39 = arith.constant -1.000000e+30 : f32
    %70 = vector.broadcast %cst_39 : f32 to vector<8x8xf32>
    %71 = arith.select %69, %67, %70 : vector<8x8xi1>, vector<8x8xf32>
    %cst_40 = arith.constant dense<0xFF800000> : vector<8xf32>
    %72 = vector.multi_reduction <maximumf>, %71, %cst_40 [1] : vector<8x8xf32> to vector<8xf32>
    %73 = vector.shape_cast %72 : vector<8xf32> to vector<8x1xf32>
    %74 = vector.broadcast %73 : vector<8x1xf32> to vector<8x8xf32>
    %75 = arith.subf %71, %74 : vector<8x8xf32>
    %76 = math.exp %75 : vector<8x8xf32>
    %cst_41 = arith.constant dense<0.000000e+00> : vector<8xf32>
    %77 = vector.multi_reduction <add>, %76, %cst_41 [1] : vector<8x8xf32> to vector<8xf32>
    %78 = vector.shape_cast %77 : vector<8xf32> to vector<8x1xf32>
    %79 = tpu.reciprocal %78 : vector<8x1xf32> -> vector<8x1xf32>
    %80 = vector.broadcast %79 : vector<8x1xf32> to vector<8x8xf32>
    %81 = arith.mulf %76, %80 : vector<8x8xf32>
    %82 = arith.truncf %81 : vector<8x8xf32> to vector<8x8xbf16>
    %cst_42 = arith.constant dense<0.000000e+00> : vector<8x8xf32>
    %83 = tpu.matmul %82, %64, %cst_42 {dimension_numbers = #tpu.dot_dimension_numbers<[1], [0], [0], [1], [0, 0, 1, 1], [], []>} : vector<8x8xbf16>, vector<8x8xbf16>, vector<8x8xf32> -> vector<8x8xf32>
    %84 = arith.truncf %83 : vector<8x8xf32> to vector<8x8xbf16>
    %c0_43 = arith.constant 0 : index
    %c0_44 = arith.constant 0 : index
    %c16_45 = arith.constant 16 : index
    %85 = vector.load %arg2[%c0_43, %c0_44, %c16_45] : memref<1x8x32xbf16, #tpu.memory_space<vmem>>, vector<1x8x8xbf16>
    %86 = vector.shape_cast %85 : vector<1x8x8xbf16> to vector<8x8xbf16>
    %87 = vector.shape_cast %84 : vector<8x8xbf16> to vector<1x8x8xbf16>
    tpu.vector_store %arg2[%c0_43, %c0_44, %c16_45], %87 {strides = array<i32>} : memref<1x8x32xbf16, #tpu.memory_space<vmem>>, vector<1x8x8xbf16>,
    %c0_46 = arith.constant 0 : index
    %c0_47 = arith.constant 0 : index
    %c24 = arith.constant 24 : index
    %88 = vector.load %arg1[%c0_46, %c0_47, %c24] : memref<1x8x96xbf16, #tpu.memory_space<vmem>>, vector<1x8x8xbf16>
    %89 = vector.shape_cast %88 : vector<1x8x8xbf16> to vector<8x8xbf16>
    %c0_48 = arith.constant 0 : index
    %c0_49 = arith.constant 0 : index
    %c56 = arith.constant 56 : index
    %90 = vector.load %arg1[%c0_48, %c0_49, %c56] : memref<1x8x96xbf16, #tpu.memory_space<vmem>>, vector<1x8x8xbf16>
    %91 = vector.shape_cast %90 : vector<1x8x8xbf16> to vector<8x8xbf16>
    %c0_50 = arith.constant 0 : index
    %c0_51 = arith.constant 0 : index
    %c88 = arith.constant 88 : index
    %92 = vector.load %arg1[%c0_50, %c0_51, %c88] : memref<1x8x96xbf16, #tpu.memory_space<vmem>>, vector<1x8x8xbf16>
    %93 = vector.shape_cast %92 : vector<1x8x8xbf16> to vector<8x8xbf16>
    %cst_52 = arith.constant dense<0.000000e+00> : vector<8x8xf32>
    %94 = tpu.matmul %89, %91, %cst_52 {dimension_numbers = #tpu.dot_dimension_numbers<[1], [1], [0], [0], [0, 0, 1, 0], [], []>} : vector<8x8xbf16>, vector<8x8xbf16>, vector<8x8xf32> -> vector<8x8xf32>
    %cst_53 = arith.constant 0.353553385 : f32
    %95 = vector.broadcast %cst_53 : f32 to vector<8x8xf32>
    %96 = arith.mulf %94, %95 : vector<8x8xf32>
    %c5_i32_54 = arith.constant 5 : i32
    %97 = vector.broadcast %c5_i32_54 : i32 to vector<8x8xi32>
    %98 = arith.cmpi slt, %0, %97 : vector<8x8xi32>
    %cst_55 = arith.constant -1.000000e+30 : f32
    %99 = vector.broadcast %cst_55 : f32 to vector<8x8xf32>
    %100 = arith.select %98, %96, %99 : vector<8x8xi1>, vector<8x8xf32>
    %cst_56 = arith.constant dense<0xFF800000> : vector<8xf32>
    %101 = vector.multi_reduction <maximumf>, %100, %cst_56 [1] : vector<8x8xf32> to vector<8xf32>
    %102 = vector.shape_cast %101 : vector<8xf32> to vector<8x1xf32>
    %103 = vector.broadcast %102 : vector<8x1xf32> to vector<8x8xf32>
    %104 = arith.subf %100, %103 : vector<8x8xf32>
    %105 = math.exp %104 : vector<8x8xf32>
    %cst_57 = arith.constant dense<0.000000e+00> : vector<8xf32>
    %106 = vector.multi_reduction <add>, %105, %cst_57 [1] : vector<8x8xf32> to vector<8xf32>
    %107 = vector.shape_cast %106 : vector<8xf32> to vector<8x1xf32>
    %108 = tpu.reciprocal %107 : vector<8x1xf32> -> vector<8x1xf32>
    %109 = vector.broadcast %108 : vector<8x1xf32> to vector<8x8xf32>
    %110 = arith.mulf %105, %109 : vector<8x8xf32>
    %111 = arith.truncf %110 : vector<8x8xf32> to vector<8x8xbf16>
    %cst_58 = arith.constant dense<0.000000e+00> : vector<8x8xf32>
    %112 = tpu.matmul %111, %93, %cst_58 {dimension_numbers = #tpu.dot_dimension_numbers<[1], [0], [0], [1], [0, 0, 1, 1], [], []>} : vector<8x8xbf16>, vector<8x8xbf16>, vector<8x8xf32> -> vector<8x8xf32>
    %113 = arith.truncf %112 : vector<8x8xf32> to vector<8x8xbf16>
    %c0_59 = arith.constant 0 : index
    %c0_60 = arith.constant 0 : index
    %c24_61 = arith.constant 24 : index
    %114 = vector.load %arg2[%c0_59, %c0_60, %c24_61] : memref<1x8x32xbf16, #tpu.memory_space<vmem>>, vector<1x8x8xbf16>
    %115 = vector.shape_cast %114 : vector<1x8x8xbf16> to vector<8x8xbf16>
    %116 = vector.shape_cast %113 : vector<8x8xbf16> to vector<1x8x8xbf16>
    tpu.vector_store %arg2[%c0_59, %c0_60, %c24_61], %116 {strides = array<i32>} : memref<1x8x32xbf16, #tpu.memory_space<vmem>>, vector<1x8x8xbf16>,
    return
  }
  func.func @transform_0(%arg0: i32) -> (i32, i32, i32) {
    %c0_i32 = arith.constant 0 : i32
    %c0_i32_0 = arith.constant 0 : i32
    %c0_i32_1 = arith.constant 0 : i32
    return %arg0, %c0_i32, %c0_i32_0 : i32, i32, i32
  }
  func.func @transform_1(%arg0: i32) -> (i32, i32, i32) {
    %c0_i32 = arith.constant 0 : i32
    %c0_i32_0 = arith.constant 0 : i32
    %c0_i32_1 = arith.constant 0 : i32
    return %arg0, %c0_i32, %c0_i32_0 : i32, i32, i32
  }
}

module attributes {stable_mosaic.version = 11 : i64} {
  func.func @_layernorm_kernel(%arg0: i32, %arg1: memref<16x32xf32, #tpu.memory_space<vmem>>, %arg2: memref<1x32xf32, #tpu.memory_space<vmem>>, %arg3: memref<1x32xf32, #tpu.memory_space<vmem>>, %arg4: memref<16x32xf32, #tpu.memory_space<vmem>>) attributes {dimension_semantics = [#tpu.dimension_semantics<parallel>], iteration_bounds = array<i64: 1>, scalar_prefetch = 0 : i64, scratch_operands = 0 : i64, tpu.core_type = #tpu.core_type<tc>, window_params = [{transform_indices = @transform_0, window_bounds = array<i64: 16, 32>}, {pipeline_mode = #tpu.pipeline_mode<synchronous>, transform_indices = @transform_1, window_bounds = array<i64: 1, 32>}, {pipeline_mode = #tpu.pipeline_mode<synchronous>, transform_indices = @transform_2, window_bounds = array<i64: 1, 32>}, {transform_indices = @transform_3, window_bounds = array<i64: 16, 32>}]} {
    %c0 = arith.constant 0 : index
    %c0_0 = arith.constant 0 : index
    %0 = vector.load %arg1[%c0, %c0_0] : memref<16x32xf32, #tpu.memory_space<vmem>>, vector<16x32xf32>
    %c0_1 = arith.constant 0 : index
    %c0_2 = arith.constant 0 : index
    %1 = vector.load %arg2[%c0_1, %c0_2] : memref<1x32xf32, #tpu.memory_space<vmem>>, vector<1x32xf32>
    %c0_3 = arith.constant 0 : index
    %c0_4 = arith.constant 0 : index
    %2 = vector.load %arg3[%c0_3, %c0_4] : memref<1x32xf32, #tpu.memory_space<vmem>>, vector<1x32xf32>
    %cst = arith.constant dense<0.000000e+00> : vector<16xf32>
    %3 = vector.multi_reduction <add>, %0, %cst [1] : vector<16x32xf32> to vector<16xf32>
    %4 = vector.shape_cast %3 : vector<16xf32> to vector<16x1xf32>
    %cst_5 = arith.constant 3.200000e+01 : f32
    %5 = vector.broadcast %cst_5 : f32 to vector<16x1xf32>
    %6 = arith.divf %4, %5 : vector<16x1xf32>
    %7 = vector.broadcast %6 : vector<16x1xf32> to vector<16x32xf32>
    %8 = arith.subf %0, %7 : vector<16x32xf32>
    %9 = arith.mulf %8, %8 : vector<16x32xf32>
    %cst_6 = arith.constant dense<0.000000e+00> : vector<16xf32>
    %10 = vector.multi_reduction <add>, %9, %cst_6 [1] : vector<16x32xf32> to vector<16xf32>
    %11 = vector.shape_cast %10 : vector<16xf32> to vector<16x1xf32>
    %cst_7 = arith.constant 3.200000e+01 : f32
    %12 = vector.broadcast %cst_7 : f32 to vector<16x1xf32>
    %13 = arith.divf %11, %12 : vector<16x1xf32>
    %14 = vector.broadcast %6 : vector<16x1xf32> to vector<16x32xf32>
    %15 = arith.subf %0, %14 : vector<16x32xf32>
    %cst_8 = arith.constant 9.99999974E-6 : f32
    %16 = vector.broadcast %cst_8 : f32 to vector<16x1xf32>
    %17 = arith.addf %13, %16 : vector<16x1xf32>
    %18 = math.rsqrt %17 : vector<16x1xf32>
    %19 = vector.broadcast %18 : vector<16x1xf32> to vector<16x32xf32>
    %20 = arith.mulf %15, %19 : vector<16x32xf32>
    %21 = vector.broadcast %1 : vector<1x32xf32> to vector<16x32xf32>
    %22 = arith.mulf %20, %21 : vector<16x32xf32>
    %23 = vector.broadcast %2 : vector<1x32xf32> to vector<16x32xf32>
    %24 = arith.addf %22, %23 : vector<16x32xf32>
    %c0_9 = arith.constant 0 : index
    %c0_10 = arith.constant 0 : index
    %25 = vector.load %arg4[%c0_9, %c0_10] : memref<16x32xf32, #tpu.memory_space<vmem>>, vector<16x32xf32>
    tpu.vector_store %arg4[%c0_9, %c0_10], %24 {strides = array<i32>} : memref<16x32xf32, #tpu.memory_space<vmem>>, vector<16x32xf32>,
    return
  }
  func.func @transform_0(%arg0: i32) -> (i32, i32) {
    %c0_i32 = arith.constant 0 : i32
    %c0_i32_0 = arith.constant 0 : i32
    return %arg0, %c0_i32 : i32, i32
  }
  func.func @transform_1(%arg0: i32) -> (i32, i32) {
    %c0_i32 = arith.constant 0 : i32
    %c0_i32_0 = arith.constant 0 : i32
    %c0_i32_1 = arith.constant 0 : i32
    return %c0_i32, %c0_i32_0 : i32, i32
  }
  func.func @transform_2(%arg0: i32) -> (i32, i32) {
    %c0_i32 = arith.constant 0 : i32
    %c0_i32_0 = arith.constant 0 : i32
    %c0_i32_1 = arith.constant 0 : i32
    return %c0_i32, %c0_i32_0 : i32, i32
  }
  func.func @transform_3(%arg0: i32) -> (i32, i32) {
    %c0_i32 = arith.constant 0 : i32
    %c0_i32_0 = arith.constant 0 : i32
    return %arg0, %c0_i32 : i32, i32
  }
}

module attributes {stable_mosaic.version = 11 : i64} {
  func.func @_ln_mlp_residual_kernel(%arg0: i32, %arg1: memref<16x32xf32, #tpu.memory_space<vmem>>, %arg2: memref<1x32xf32, #tpu.memory_space<vmem>>, %arg3: memref<1x32xf32, #tpu.memory_space<vmem>>, %arg4: memref<32x128xbf16, #tpu.memory_space<vmem>>, %arg5: memref<1x128xf32, #tpu.memory_space<vmem>>, %arg6: memref<128x32xbf16, #tpu.memory_space<vmem>>, %arg7: memref<1x32xf32, #tpu.memory_space<vmem>>, %arg8: memref<16x32xf32, #tpu.memory_space<vmem>>) attributes {dimension_semantics = [#tpu.dimension_semantics<parallel>], iteration_bounds = array<i64: 1>, scalar_prefetch = 0 : i64, scratch_operands = 0 : i64, tpu.core_type = #tpu.core_type<tc>, window_params = [{transform_indices = @transform_0, window_bounds = array<i64: 16, 32>}, {pipeline_mode = #tpu.pipeline_mode<synchronous>, transform_indices = @transform_1, window_bounds = array<i64: 1, 32>}, {pipeline_mode = #tpu.pipeline_mode<synchronous>, transform_indices = @transform_2, window_bounds = array<i64: 1, 32>}, {pipeline_mode = #tpu.pipeline_mode<synchronous>, transform_indices = @transform_3, window_bounds = array<i64: 32, 128>}, {pipeline_mode = #tpu.pipeline_mode<synchronous>, transform_indices = @transform_4, window_bounds = array<i64: 1, 128>}, {pipeline_mode = #tpu.pipeline_mode<synchronous>, transform_indices = @transform_5, window_bounds = array<i64: 128, 32>}, {pipeline_mode = #tpu.pipeline_mode<synchronous>, transform_indices = @transform_6, window_bounds = array<i64: 1, 32>}, {transform_indices = @transform_7, window_bounds = array<i64: 16, 32>}]} {
    %c0 = arith.constant 0 : index
    %c0_0 = arith.constant 0 : index
    %0 = vector.load %arg1[%c0, %c0_0] : memref<16x32xf32, #tpu.memory_space<vmem>>, vector<16x32xf32>
    %c0_1 = arith.constant 0 : index
    %c0_2 = arith.constant 0 : index
    %1 = vector.load %arg2[%c0_1, %c0_2] : memref<1x32xf32, #tpu.memory_space<vmem>>, vector<1x32xf32>
    %c0_3 = arith.constant 0 : index
    %c0_4 = arith.constant 0 : index
    %2 = vector.load %arg3[%c0_3, %c0_4] : memref<1x32xf32, #tpu.memory_space<vmem>>, vector<1x32xf32>
    %cst = arith.constant dense<0.000000e+00> : vector<16xf32>
    %3 = vector.multi_reduction <add>, %0, %cst [1] : vector<16x32xf32> to vector<16xf32>
    %4 = vector.shape_cast %3 : vector<16xf32> to vector<16x1xf32>
    %cst_5 = arith.constant 3.200000e+01 : f32
    %5 = vector.broadcast %cst_5 : f32 to vector<16x1xf32>
    %6 = arith.divf %4, %5 : vector<16x1xf32>
    %7 = vector.broadcast %6 : vector<16x1xf32> to vector<16x32xf32>
    %8 = arith.subf %0, %7 : vector<16x32xf32>
    %9 = arith.mulf %8, %8 : vector<16x32xf32>
    %cst_6 = arith.constant dense<0.000000e+00> : vector<16xf32>
    %10 = vector.multi_reduction <add>, %9, %cst_6 [1] : vector<16x32xf32> to vector<16xf32>
    %11 = vector.shape_cast %10 : vector<16xf32> to vector<16x1xf32>
    %cst_7 = arith.constant 3.200000e+01 : f32
    %12 = vector.broadcast %cst_7 : f32 to vector<16x1xf32>
    %13 = arith.divf %11, %12 : vector<16x1xf32>
    %14 = vector.broadcast %6 : vector<16x1xf32> to vector<16x32xf32>
    %15 = arith.subf %0, %14 : vector<16x32xf32>
    %cst_8 = arith.constant 9.99999974E-6 : f32
    %16 = vector.broadcast %cst_8 : f32 to vector<16x1xf32>
    %17 = arith.addf %13, %16 : vector<16x1xf32>
    %18 = math.rsqrt %17 : vector<16x1xf32>
    %19 = vector.broadcast %18 : vector<16x1xf32> to vector<16x32xf32>
    %20 = arith.mulf %15, %19 : vector<16x32xf32>
    %21 = vector.broadcast %1 : vector<1x32xf32> to vector<16x32xf32>
    %22 = arith.mulf %20, %21 : vector<16x32xf32>
    %23 = vector.broadcast %2 : vector<1x32xf32> to vector<16x32xf32>
    %24 = arith.addf %22, %23 : vector<16x32xf32>
    %25 = arith.truncf %24 : vector<16x32xf32> to vector<16x32xbf16>
    %c0_9 = arith.constant 0 : index
    %c0_10 = arith.constant 0 : index
    %26 = vector.load %arg7[%c0_9, %c0_10] : memref<1x32xf32, #tpu.memory_space<vmem>>, vector<1x32xf32>
    %27 = vector.broadcast %26 : vector<1x32xf32> to vector<16x32xf32>
    %28 = arith.addf %0, %27 : vector<16x32xf32>
    %c0_11 = arith.constant 0 : index
    %c0_12 = arith.constant 0 : index
    %29 = vector.load %arg4[%c0_11, %c0_12] : memref<32x128xbf16, #tpu.memory_space<vmem>>, vector<32x128xbf16>
    %cst_13 = arith.constant dense<0.000000e+00> : vector<16x128xf32>
    %30 = tpu.matmul %25, %29, %cst_13 {dimension_numbers = #tpu.dot_dimension_numbers<[1], [0], [0], [1], [0, 0, 1, 1], [], []>} : vector<16x32xbf16>, vector<32x128xbf16>, vector<16x128xf32> -> vector<16x128xf32>
    %c0_14 = arith.constant 0 : index
    %c0_15 = arith.constant 0 : index
    %31 = vector.load %arg5[%c0_14, %c0_15] : memref<1x128xf32, #tpu.memory_space<vmem>>, vector<1x128xf32>
    %32 = vector.broadcast %31 : vector<1x128xf32> to vector<16x128xf32>
    %33 = arith.addf %30, %32 : vector<16x128xf32>
    %cst_16 = arith.constant 5.000000e-01 : f32
    %34 = vector.broadcast %cst_16 : f32 to vector<16x128xf32>
    %35 = arith.mulf %34, %33 : vector<16x128xf32>
    %cst_17 = arith.constant 0.707106769 : f32
    %36 = vector.broadcast %cst_17 : f32 to vector<16x128xf32>
    %37 = arith.mulf %33, %36 : vector<16x128xf32>
    %38 = math.erf %37 : vector<16x128xf32>
    %cst_18 = arith.constant 1.000000e+00 : f32
    %39 = vector.broadcast %cst_18 : f32 to vector<16x128xf32>
    %40 = arith.addf %39, %38 : vector<16x128xf32>
    %41 = arith.mulf %35, %40 : vector<16x128xf32>
    %42 = arith.truncf %41 : vector<16x128xf32> to vector<16x128xbf16>
    %c0_19 = arith.constant 0 : index
    %c0_20 = arith.constant 0 : index
    %43 = vector.load %arg6[%c0_19, %c0_20] : memref<128x32xbf16, #tpu.memory_space<vmem>>, vector<128x32xbf16>
    %cst_21 = arith.constant dense<0.000000e+00> : vector<16x32xf32>
    %44 = tpu.matmul %42, %43, %cst_21 {dimension_numbers = #tpu.dot_dimension_numbers<[1], [0], [0], [1], [0, 0, 1, 1], [], []>} : vector<16x128xbf16>, vector<128x32xbf16>, vector<16x32xf32> -> vector<16x32xf32>
    %45 = arith.addf %28, %44 : vector<16x32xf32>
    %c0_22 = arith.constant 0 : index
    %c0_23 = arith.constant 0 : index
    %46 = vector.load %arg8[%c0_22, %c0_23] : memref<16x32xf32, #tpu.memory_space<vmem>>, vector<16x32xf32>
    tpu.vector_store %arg8[%c0_22, %c0_23], %45 {strides = array<i32>} : memref<16x32xf32, #tpu.memory_space<vmem>>, vector<16x32xf32>,
    return
  }
  func.func @transform_0(%arg0: i32) -> (i32, i32) {
    %c0_i32 = arith.constant 0 : i32
    %c0_i32_0 = arith.constant 0 : i32
    return %arg0, %c0_i32 : i32, i32
  }
  func.func @transform_1(%arg0: i32) -> (i32, i32) {
    %c0_i32 = arith.constant 0 : i32
    %c0_i32_0 = arith.constant 0 : i32
    %c0_i32_1 = arith.constant 0 : i32
    return %c0_i32, %c0_i32_0 : i32, i32
  }
  func.func @transform_2(%arg0: i32) -> (i32, i32) {
    %c0_i32 = arith.constant 0 : i32
    %c0_i32_0 = arith.constant 0 : i32
    %c0_i32_1 = arith.constant 0 : i32
    return %c0_i32, %c0_i32_0 : i32, i32
  }
  func.func @transform_3(%arg0: i32) -> (i32, i32) {
    %c0_i32 = arith.constant 0 : i32
    %c0_i32_0 = arith.constant 0 : i32
    %c0_i32_1 = arith.constant 0 : i32
    return %c0_i32, %c0_i32_0 : i32, i32
  }
  func.func @transform_4(%arg0: i32) -> (i32, i32) {
    %c0_i32 = arith.constant 0 : i32
    %c0_i32_0 = arith.constant 0 : i32
    %c0_i32_1 = arith.constant 0 : i32
    return %c0_i32, %c0_i32_0 : i32, i32
  }
  func.func @transform_5(%arg0: i32) -> (i32, i32) {
    %c0_i32 = arith.constant 0 : i32
    %c0_i32_0 = arith.constant 0 : i32
    %c0_i32_1 = arith.constant 0 : i32
    return %c0_i32, %c0_i32_0 : i32, i32
  }
  func.func @transform_6(%arg0: i32) -> (i32, i32) {
    %c0_i32 = arith.constant 0 : i32
    %c0_i32_0 = arith.constant 0 : i32
    %c0_i32_1 = arith.constant 0 : i32
    return %c0_i32, %c0_i32_0 : i32, i32
  }
  func.func @transform_7(%arg0: i32) -> (i32, i32) {
    %c0_i32 = arith.constant 0 : i32
    %c0_i32_0 = arith.constant 0 : i32
    return %arg0, %c0_i32 : i32, i32
  }
}

</mosaic_0001>

<llo_original>
// kernel: vit_forward.11
$region0: #{vit_forward.11}
  #allocation0 [shape = 'u32[]', space=smem, size = 0x4, offset = 0x4, fixed_abs, tag = 'smem constant byte address 0x4 - core index']
  #allocation1 [shape = 'u32[144,128]{1,0:T(1,128)}', space=vmem, size = 0x12000, scoped, tag = 'internal scratch']
  %s0 = inlined_call_operand.vmem [shape: f32[16,32], index: 0, kind: input, shape index: {}]
  %s1 = inlined_call_operand.vmem [shape: f32[1,32], index: 1, kind: input, shape index: {}]
  %s2 = inlined_call_operand.vmem [shape: f32[1,32], index: 2, kind: input, shape index: {}]
  %s3 = inlined_call_operand.vmem [shape: bf16[32,96], index: 3, kind: input, shape index: {}]
  %s4 = inlined_call_operand.vmem [shape: f32[1,96], index: 4, kind: input, shape index: {}]
  %s5 = inlined_call_operand.vmem [shape: bf16[16,96], index: 5, kind: output, shape index: {}]
  %s6 = sld [smem:[#allocation0]]
  $region30: #{vit_forward.11} parent=0
    _
  %s8 = ssub.s32 1, %s6
  %s9 = scalar_select 0, %s8, %s6
  // Predicated region
  $region2: #{vit_forward.11} parent=0 // pred_check
    _
  $region3: #{vit_forward.11} parent=0 // pred_check_branch
    %11 = sbr.rel (0) target = $region5
  $region4: #{vit_forward.11} parent=0 // pred_region
    _
  $region5: #{vit_forward.11} parent=0 // pred_fallthru
    _
  // Predicated region
  $region6: #{vit_forward.11} parent=0 // pred_check
    _
  $region7: #{vit_forward.11} parent=0 // pred_check_branch
    %13 = sbr.rel (0) target = $region9
  $region8: #{vit_forward.11} parent=0 // pred_region
    _
  $region9: #{vit_forward.11} parent=0 // pred_fallthru
    _
  // Predicated region
  $region10: #{vit_forward.11} parent=0 // pred_check
    _
  $region11: #{vit_forward.11} parent=0 // pred_check_branch
    %15 = sbr.rel (0) target = $region13
  $region12: #{vit_forward.11} parent=0 // pred_region
    _
  $region13: #{vit_forward.11} parent=0 // pred_fallthru
    _
  // Predicated region
  $region14: #{vit_forward.11} parent=0 // pred_check
    _
  $region15: #{vit_forward.11} parent=0 // pred_check_branch
    %17 = sbr.rel (0) target = $region17
  $region16: #{vit_forward.11} parent=0 // pred_region
    _
  $region17: #{vit_forward.11} parent=0 // pred_fallthru
    _
  // Predicated region
  $region18: #{vit_forward.11} parent=0 // pred_check
    _
  $region19: #{vit_forward.11} parent=0 // pred_check_branch
    %19 = sbr.rel (0) target = $region21
  $region20: #{vit_forward.11} parent=0 // pred_region
    _
  $region21: #{vit_forward.11} parent=0 // pred_fallthru
    _
  %v21 = vld [vmem:[%s0] sm:$0xff]
  %v22 = vld [vmem:[%s0 + $0x8] sm:$0xff]
  %v23 = vld [vmem:[%s1] sm:$0x1]
  %v24 = vld [vmem:[%s2] sm:$0x1]
  %vm25 = vcmask 261120
  %v26 = vsel %vm25, %v21, 0.0
  %27 = vadd.xlane.f32.xlu0 %v26
  %v28 = vpop.xlane.xlu0 %27
  %v29 = vsel %vm25, %v22, 0.0
  %30 = vadd.xlane.f32.xlu0 %v29
  %v31 = vpop.xlane.xlu0 %30
  %v32 = vrcp.pop 32.0
  %v33 = vmul.f32 %v28, %v32
  %v34 = vmul.f32 %v31, %v32
  %v35 = vsub.f32 %v21, %v33
  %v36 = vsub.f32 %v22, %v34
  %v37 = vmul.f32 %v35, %v35
  %v38 = vmul.f32 %v36, %v36
  %v39 = vsel %vm25, %v37, 0.0
  %40 = vadd.xlane.f32.xlu0 %v39
  %v41 = vpop.xlane.xlu0 %40
  %v42 = vsel %vm25, %v38, 0.0
  %43 = vadd.xlane.f32.xlu0 %v42
  %v44 = vpop.xlane.xlu0 %43
  %v45 = vmul.f32 %v41, %v32
  %v46 = vmul.f32 %v44, %v32
  %v47 = vadd.f32 %v45, 1e-05
  %v48 = vadd.f32 %v46, 1e-05
  %v49 = vrsqrt.pop %v47
  %v50 = vrsqrt.pop %v48
  %v51 = vmul.f32 %v35, %v49
  %v52 = vmul.f32 %v36, %v50
  %v54 = vlaneseq
  %v55 = vshrl.u32 %v54, 7
  %v56 = vsub.s32 0, %v55
  %v57 = vrot.slane %v23, %v56
  %v59 = vmul.f32 %v51, %v57
  %v60 = vmul.f32 %v52, %v57
  %v62 = vlaneseq
  %v63 = vshrl.u32 %v62, 7
  %v64 = vsub.s32 0, %v63
  %v65 = vrot.slane %v24, %v64
  %v67 = vadd.f32 %v59, %v65
  %v68 = vadd.f32 %v60, %v65
  %v69 = vld [vmem:[%s3] sm:$0xf]
  %v70 = vld [vmem:[%s3 + $0x4] sm:$0xf]
  %v71 = vld [vmem:[%s3 + $0x8] sm:$0xf]
  %v72 = vld [vmem:[%s3 + $0xc] sm:$0xf]
  %v73 = vpack.c.bf16 %v68, %v67
  %v74 = vld [vmem:[%s4] sm:$0x1]
  %v76 = vlaneseq
  %v77 = vshrl.u32 %v76, 7
  %v78 = vsub.s32 0, %v77
  %v79 = vrot.slane %v74, %v78
  %v85 = vunpack.c.l.b16 %v69
  %v86 = vunpack.c.l.b16 %v70
  %v87 = vunpack.c.l.b16 %v71
  %v88 = vunpack.c.l.b16 %v72
  %v89 = vpack.c.b16 %v86, %v85
  %v90 = vpack.c.b16 %v88, %v87
  %v94 = vsel %vm25, %v73, 0
  %96 = vmatprep.subr.bf16.mxu0 0
  %97 = vmatpush1.bf16.msra.mxu0 %v89
  %98 = vmatprep.subr.bf16.mxu0 0
  %99 = vmatpush1.bf16.msra.mxu0 %v90
  %100 = vmatprep.subr.bf16.mxu0 0
  %101 = vmatpush1.bf16.msra.mxu0 0
  %102 = vmatprep.subr.bf16.mxu0 0
  %103 = vmatpush1.bf16.msra.mxu0 0
  %104 = vmatprep.subr.bf16.mxu0 0
  %105 = vmatpush1.bf16.msra.mxu0 0
  %106 = vmatprep.subr.bf16.mxu0 0
  %107 = vmatpush1.bf16.msra.mxu0 0
  %108 = vmatprep.subr.bf16.mxu0 0
  %109 = vmatpush1.bf16.msra.mxu0 0
  %110 = vmatprep.subr.bf16.mxu0 0
  %111 = vmatpush1.bf16.msra.mxu0 0
  %112 = vmatprep.subr.bf16.mxu0 0
  %113 = vmatpush1.bf16.msra.mxu0 0
  %114 = vmatprep.subr.bf16.mxu0 0
  %115 = vmatpush1.bf16.msra.mxu0 0
  %116 = vmatprep.subr.bf16.mxu0 0
  %117 = vmatpush1.bf16.msra.mxu0 0
  %118 = vmatprep.subr.bf16.mxu0 0
  %119 = vmatpush1.bf16.msra.mxu0 0
  %120 = vmatprep.subr.bf16.mxu0 0
  %121 = vmatpush1.bf16.msra.mxu0 0
  %122 = vmatprep.subr.bf16.mxu0 0
  %123 = vmatpush1.bf16.msra.mxu0 0
  %124 = vmatprep.subr.bf16.mxu0 0
  %125 = vmatpush1.bf16.msra.mxu0 0
  %126 = vmatprep.subr.bf16.mxu0 0
  %127 = vmatpush1.bf16.msra.mxu0 0
  %128 = vmatprep.mubr.bf16.mxu0 0
  %129 = vmatmul.mubr.bf16.gmra.mrb[0].mxu0 %v94
  %v130 = vpop.f32.mrb[0].mxu0
  %v131 = vadd.f32 %v79, %v130
  %v132 = vpop.f32.mrb[0].mxu0
  %v133 = vpop.f32.mrb[0].mxu0
  %v134 = vadd.f32 %v79, %v133
  %v135 = vpop.f32.mrb[0].mxu0
  %136 = vdwg.mxu0
  %v137 = vpack.c.bf16 %v134, %v131
  %v139 = vunpack.c.l.b16 %v137
  %v140 = vunpack.c.h.b16 %v137
  %v141 = vpack.c.b16 %v139, %v139
  %v142 = vpack.c.b16 %v140, %v140
  %vm145 = vcmask 781312
  %146 = vst.msk [vmem:[%s5] sm:$0xf] %vm145, %v141
  %147 = vst.msk [vmem:[%s5 + $0x4] sm:$0xf] %vm145, %v142
  // Predicated region
  $region22: #{vit_forward.11} parent=0 // pred_check
    _
  $region23: #{vit_forward.11} parent=0 // pred_check_branch
    %149 = sbr.rel (0) target = $region25
  $region24: #{vit_forward.11} parent=0 // pred_region
    _
  $region25: #{vit_forward.11} parent=0 // pred_fallthru
    _
  // Predicated region
  $region26: #{vit_forward.11} parent=0 // pred_check
    _
  $region27: #{vit_forward.11} parent=0 // pred_check_branch
    %151 = sbr.rel (0) target = $region29
  $region28: #{vit_forward.11} parent=0 // pred_region
    _
  $region29: #{vit_forward.11} parent=0 // pred_fallthru
    _

// kernel: vit_forward.13
$region0: #{vit_forward.13}
  #allocation0 [shape = 'u32[]', space=smem, size = 0x4, offset = 0x4, fixed_abs, tag = 'smem constant byte address 0x4 - core index']
  #allocation1 [shape = 'u32[144,128]{1,0:T(1,128)}', space=vmem, size = 0x12000, scoped, tag = 'internal scratch']
  %s0 = inlined_call_operand.vmem [shape: bf16[16,32], index: 0, kind: input, shape index: {}]
  %s1 = inlined_call_operand.vmem [shape: bf16[32,32], index: 1, kind: input, shape index: {}]
  %s2 = inlined_call_operand.vmem [shape: f32[1,32], index: 2, kind: input, shape index: {}]
  %s3 = inlined_call_operand.vmem [shape: f32[16,32], index: 3, kind: input, shape index: {}]
  %s4 = inlined_call_operand.vmem [shape: f32[16,32], index: 4, kind: output, shape index: {}]
  %s5 = sld [smem:[#allocation0]]
  $region26: #{vit_forward.13} parent=0
    _
  %s7 = ssub.s32 1, %s5
  %s8 = scalar_select 0, %s7, %s5
  // Predicated region
  $region2: #{vit_forward.13} parent=0 // pred_check
    _
  $region3: #{vit_forward.13} parent=0 // pred_check_branch
    %10 = sbr.rel (0) target = $region5
  $region4: #{vit_forward.13} parent=0 // pred_region
    _
  $region5: #{vit_forward.13} parent=0 // pred_fallthru
    _
  // Predicated region
  $region6: #{vit_forward.13} parent=0 // pred_check
    _
  $region7: #{vit_forward.13} parent=0 // pred_check_branch
    %12 = sbr.rel (0) target = $region9
  $region8: #{vit_forward.13} parent=0 // pred_region
    _
  $region9: #{vit_forward.13} parent=0 // pred_fallthru
    _
  // Predicated region
  $region10: #{vit_forward.13} parent=0 // pred_check
    _
  $region11: #{vit_forward.13} parent=0 // pred_check_branch
    %14 = sbr.rel (0) target = $region13
  $region12: #{vit_forward.13} parent=0 // pred_region
    _
  $region13: #{vit_forward.13} parent=0 // pred_fallthru
    _
  // Predicated region
  $region14: #{vit_forward.13} parent=0 // pred_check
    _
  $region15: #{vit_forward.13} parent=0 // pred_check_branch
    %16 = sbr.rel (0) target = $region17
  $region16: #{vit_forward.13} parent=0 // pred_region
    _
  $region17: #{vit_forward.13} parent=0 // pred_fallthru
    _
  %v18 = vld [vmem:[%s0] sm:$0xf]
  %v19 = vld [vmem:[%s0 + $0x4] sm:$0xf]
  %v20 = vld [vmem:[%s1] sm:$0xf]
  %v21 = vld [vmem:[%s1 + $0x4] sm:$0xf]
  %v22 = vld [vmem:[%s1 + $0x8] sm:$0xf]
  %v23 = vld [vmem:[%s1 + $0xc] sm:$0xf]
  %v24 = vld [vmem:[%s2] sm:$0x1]
  %v26 = vlaneseq
  %v27 = vshrl.u32 %v26, 7
  %v28 = vsub.s32 0, %v27
  %v29 = vrot.slane %v24, %v28
  %v33 = vunpack.c.l.b16 %v18
  %v34 = vunpack.c.l.b16 %v19
  %v35 = vpack.c.b16 %v34, %v33
  %v40 = vunpack.c.l.b16 %v20
  %v41 = vunpack.c.l.b16 %v21
  %v42 = vunpack.c.l.b16 %v22
  %v43 = vunpack.c.l.b16 %v23
  %v44 = vpack.c.b16 %v41, %v40
  %v45 = vpack.c.b16 %v43, %v42
  %vm48 = vcmask 261120
  %v50 = vsel %vm48, %v35, 0
  %52 = vmatprep.subr.bf16.mxu0 0
  %53 = vmatpush1.bf16.msra.mxu0 %v44
  %54 = vmatprep.subr.bf16.mxu0 0
  %55 = vmatpush1.bf16.msra.mxu0 %v45
  %56 = vmatprep.subr.bf16.mxu0 0
  %57 = vmatpush1.bf16.msra.mxu0 0
  %58 = vmatprep.subr.bf16.mxu0 0
  %59 = vmatpush1.bf16.msra.mxu0 0
  %60 = vmatprep.subr.bf16.mxu0 0
  %61 = vmatpush1.bf16.msra.mxu0 0
  %62 = vmatprep.subr.bf16.mxu0 0
  %63 = vmatpush1.bf16.msra.mxu0 0
  %64 = vmatprep.subr.bf16.mxu0 0
  %65 = vmatpush1.bf16.msra.mxu0 0
  %66 = vmatprep.subr.bf16.mxu0 0
  %67 = vmatpush1.bf16.msra.mxu0 0
  %68 = vmatprep.subr.bf16.mxu0 0
  %69 = vmatpush1.bf16.msra.mxu0 0
  %70 = vmatprep.subr.bf16.mxu0 0
  %71 = vmatpush1.bf16.msra.mxu0 0
  %72 = vmatprep.subr.bf16.mxu0 0
  %73 = vmatpush1.bf16.msra.mxu0 0
  %74 = vmatprep.subr.bf16.mxu0 0
  %75 = vmatpush1.bf16.msra.mxu0 0
  %76 = vmatprep.subr.bf16.mxu0 0
  %77 = vmatpush1.bf16.msra.mxu0 0
  %78 = vmatprep.subr.bf16.mxu0 0
  %79 = vmatpush1.bf16.msra.mxu0 0
  %80 = vmatprep.subr.bf16.mxu0 0
  %81 = vmatpush1.bf16.msra.mxu0 0
  %82 = vmatprep.subr.bf16.mxu0 0
  %83 = vmatpush1.bf16.msra.mxu0 0
  %84 = vmatprep.mubr.bf16.mxu0 0
  %85 = vmatmul.mubr.bf16.gmra.mrb[0].mxu0 %v50
  %v86 = vpop.f32.mrb[0].mxu0
  %v87 = vadd.f32 %v29, %v86
  %v88 = vpop.f32.mrb[0].mxu0
  %v89 = vpop.f32.mrb[0].mxu0
  %v90 = vadd.f32 %v29, %v89
  %v91 = vpop.f32.mrb[0].mxu0
  %92 = vdwg.mxu0
  %v93 = vld [vmem:[%s3] sm:$0xff]
  %v94 = vld [vmem:[%s3 + $0x8] sm:$0xff]
  %v95 = vadd.f32 %v87, %v93
  %v96 = vadd.f32 %v90, %v94
  %97 = vst.msk [vmem:[%s4] sm:$0xff] %vm48, %v95
  %98 = vst.msk [vmem:[%s4 + $0x8] sm:$0xff] %vm48, %v96
  // Predicated region
  $region18: #{vit_forward.13} parent=0 // pred_check
    _
  $region19: #{vit_forward.13} parent=0 // pred_check_branch
    %100 = sbr.rel (0) target = $region21
  $region20: #{vit_forward.13} parent=0 // pred_region
    _
  $region21: #{vit_forward.13} parent=0 // pred_fallthru
    _
  // Predicated region
  $region22: #{vit_forward.13} parent=0 // pred_check
    _
  $region23: #{vit_forward.13} parent=0 // pred_check_branch
    %102 = sbr.rel (0) target = $region25
  $region24: #{vit_forward.13} parent=0 // pred_region
    _
  $region25: #{vit_forward.13} parent=0 // pred_fallthru
    _

// kernel: vit_forward.10
$region0: #{vit_forward.10}
  #allocation0 [shape = 'u32[]', space=smem, size = 0x4, offset = 0x4, fixed_abs, tag = 'smem constant byte address 0x4 - core index']
  #allocation1 [shape = 'u32[144,128]{1,0:T(1,128)}', space=vmem, size = 0x12000, scoped, tag = 'internal scratch']
  %s0 = inlined_call_operand.vmem [shape: f32[8,192], index: 0, kind: input, shape index: {}]
  %s1 = inlined_call_operand.vmem [shape: bf16[192,32], index: 1, kind: input, shape index: {}]
  %s2 = inlined_call_operand.vmem [shape: f32[1,32], index: 2, kind: input, shape index: {}]
  %s3 = inlined_call_operand.vmem [shape: f32[8,32], index: 3, kind: output, shape index: {}]
  %s4 = sld [smem:[#allocation0]]
  $region22: #{vit_forward.10} parent=0
    _
  %s6 = ssub.s32 1, %s4
  %s7 = scalar_select 0, %s6, %s4
  // Predicated region
  $region2: #{vit_forward.10} parent=0 // pred_check
    _
  $region3: #{vit_forward.10} parent=0 // pred_check_branch
    %9 = sbr.rel (0) target = $region5
  $region4: #{vit_forward.10} parent=0 // pred_region
    _
  $region5: #{vit_forward.10} parent=0 // pred_fallthru
    _
  // Predicated region
  $region6: #{vit_forward.10} parent=0 // pred_check
    _
  $region7: #{vit_forward.10} parent=0 // pred_check_branch
    %11 = sbr.rel (0) target = $region9
  $region8: #{vit_forward.10} parent=0 // pred_region
    _
  $region9: #{vit_forward.10} parent=0 // pred_fallthru
    _
  // Predicated region
  $region10: #{vit_forward.10} parent=0 // pred_check
    _
  $region11: #{vit_forward.10} parent=0 // pred_check_branch
    %13 = sbr.rel (0) target = $region13
  $region12: #{vit_forward.10} parent=0 // pred_region
    _
  $region13: #{vit_forward.10} parent=0 // pred_fallthru
    _
  %v15 = vld [vmem:[%s0] sm:$0xff]
  %v16 = vld [vmem:[%s0 + $0x8] sm:$0xff]
  %v17 = vld [vmem:[%s1] sm:$0xf]
  %v18 = vld [vmem:[%s1 + $0x4] sm:$0xf]
  %v19 = vld [vmem:[%s1 + $0x8] sm:$0xf]
  %v20 = vld [vmem:[%s1 + $0xc] sm:$0xf]
  %v21 = vld [vmem:[%s1 + $0x10] sm:$0xf]
  %v22 = vld [vmem:[%s1 + $0x14] sm:$0xf]
  %v23 = vld [vmem:[%s1 + $0x18] sm:$0xf]
  %v24 = vld [vmem:[%s1 + $0x1c] sm:$0xf]
  %v25 = vld [vmem:[%s1 + $0x20] sm:$0xf]
  %v26 = vld [vmem:[%s1 + $0x24] sm:$0xf]
  %v27 = vld [vmem:[%s1 + $0x28] sm:$0xf]
  %v28 = vld [vmem:[%s1 + $0x2c] sm:$0xf]
  %v29 = vld [vmem:[%s1 + $0x30] sm:$0xf]
  %v30 = vld [vmem:[%s1 + $0x34] sm:$0xf]
  %v31 = vld [vmem:[%s1 + $0x38] sm:$0xf]
  %v32 = vld [vmem:[%s1 + $0x3c] sm:$0xf]
  %v33 = vld [vmem:[%s1 + $0x40] sm:$0xf]
  %v34 = vld [vmem:[%s1 + $0x44] sm:$0xf]
  %v35 = vld [vmem:[%s1 + $0x48] sm:$0xf]
  %v36 = vld [vmem:[%s1 + $0x4c] sm:$0xf]
  %v37 = vld [vmem:[%s1 + $0x50] sm:$0xf]
  %v38 = vld [vmem:[%s1 + $0x54] sm:$0xf]
  %v39 = vld [vmem:[%s1 + $0x58] sm:$0xf]
  %v40 = vld [vmem:[%s1 + $0x5c] sm:$0xf]
  %v41 = vpack.c.bf16 %v15, %v15
  %v42 = vpack.c.bf16 %v16, %v16
  %v43 = vld [vmem:[%s2] sm:$0x1]
  %v45 = vlaneseq
  %v46 = vshrl.u32 %v45, 7
  %v47 = vsub.s32 0, %v46
  %v48 = vrot.slane %v43, %v47
  %v74 = vunpack.c.l.b16 %v17
  %v75 = vunpack.c.l.b16 %v18
  %v76 = vunpack.c.l.b16 %v19
  %v77 = vunpack.c.l.b16 %v20
  %v78 = vunpack.c.l.b16 %v21
  %v79 = vunpack.c.l.b16 %v22
  %v80 = vunpack.c.l.b16 %v23
  %v81 = vunpack.c.l.b16 %v24
  %v82 = vunpack.c.l.b16 %v25
  %v83 = vunpack.c.l.b16 %v26
  %v84 = vunpack.c.l.b16 %v27
  %v85 = vunpack.c.l.b16 %v28
  %v86 = vunpack.c.l.b16 %v29
  %v87 = vunpack.c.l.b16 %v30
  %v88 = vunpack.c.l.b16 %v31
  %v89 = vunpack.c.l.b16 %v32
  %v90 = vunpack.c.l.b16 %v33
  %v91 = vunpack.c.l.b16 %v34
  %v92 = vunpack.c.l.b16 %v35
  %v93 = vunpack.c.l.b16 %v36
  %v94 = vunpack.c.l.b16 %v37
  %v95 = vunpack.c.l.b16 %v38
  %v96 = vunpack.c.l.b16 %v39
  %v97 = vunpack.c.l.b16 %v40
  %v98 = vpack.c.b16 %v75, %v74
  %v99 = vpack.c.b16 %v77, %v76
  %v100 = vpack.c.b16 %v79, %v78
  %v101 = vpack.c.b16 %v81, %v80
  %v102 = vpack.c.b16 %v83, %v82
  %v103 = vpack.c.b16 %v85, %v84
  %v104 = vpack.c.b16 %v87, %v86
  %v105 = vpack.c.b16 %v89, %v88
  %v106 = vpack.c.b16 %v91, %v90
  %v107 = vpack.c.b16 %v93, %v92
  %v108 = vpack.c.b16 %v95, %v94
  %v109 = vpack.c.b16 %v97, %v96
  %vm122 = vcmask 523264
  %v124 = vsel %vm122, %v42, 0
  %126 = vmatprep.subr.bf16.mxu0 0
  %127 = vmatpush1.bf16.msra.mxu0 %v98
  %128 = vmatprep.subr.bf16.mxu0 0
  %129 = vmatpush1.bf16.msra.mxu0 %v99
  %130 = vmatprep.subr.bf16.mxu0 0
  %131 = vmatpush1.bf16.msra.mxu0 %v100
  %132 = vmatprep.subr.bf16.mxu0 0
  %133 = vmatpush1.bf16.msra.mxu0 %v101
  %134 = vmatprep.subr.bf16.mxu0 0
  %135 = vmatpush1.bf16.msra.mxu0 %v102
  %136 = vmatprep.subr.bf16.mxu0 0
  %137 = vmatpush1.bf16.msra.mxu0 %v103
  %138 = vmatprep.subr.bf16.mxu0 0
  %139 = vmatpush1.bf16.msra.mxu0 %v104
  %140 = vmatprep.subr.bf16.mxu0 0
  %141 = vmatpush1.bf16.msra.mxu0 %v105
  %142 = vmatprep.subr.bf16.mxu0 0
  %143 = vmatpush1.bf16.msra.mxu0 %v106
  %144 = vmatprep.subr.bf16.mxu0 0
  %145 = vmatpush1.bf16.msra.mxu0 %v107
  %146 = vmatprep.subr.bf16.mxu0 0
  %147 = vmatpush1.bf16.msra.mxu0 %v108
  %148 = vmatprep.subr.bf16.mxu0 0
  %149 = vmatpush1.bf16.msra.mxu0 %v109
  %150 = vmatprep.subr.bf16.mxu0 0
  %151 = vmatpush1.bf16.msra.mxu0 0
  %152 = vmatprep.subr.bf16.mxu0 0
  %153 = vmatpush1.bf16.msra.mxu0 0
  %154 = vmatprep.subr.bf16.mxu0 0
  %155 = vmatpush1.bf16.msra.mxu0 0
  %156 = vmatprep.subr.bf16.mxu0 0
  %157 = vmatpush1.bf16.msra.mxu0 0
  %158 = vmatprep.mubr.bf16.mxu0 %v124
  %159 = vmatmul.mubr.bf16.gmra.mrb[0].mxu0 %v41
  %v160 = vpop.f32.mrb[0].mxu0
  %v161 = vadd.f32 %v48, %v160
  %v162 = vpop.f32.mrb[0].mxu0
  %v163 = vpop.f32.mrb[0].mxu0
  %v164 = vpop.f32.mrb[0].mxu0
  %165 = vdwg.mxu0
  %vm166 = vcmask 261120
  %167 = vst.msk [vmem:[%s3] sm:$0xff] %vm166, %v161
  // Predicated region
  $region14: #{vit_forward.10} parent=0 // pred_check
    _
  $region15: #{vit_forward.10} parent=0 // pred_check_branch
    %169 = sbr.rel (0) target = $region17
  $region16: #{vit_forward.10} parent=0 // pred_region
    _
  $region17: #{vit_forward.10} parent=0 // pred_fallthru
    _
  // Predicated region
  $region18: #{vit_forward.10} parent=0 // pred_check
    _
  $region19: #{vit_forward.10} parent=0 // pred_check_branch
    %171 = sbr.rel (0) target = $region21
  $region20: #{vit_forward.10} parent=0 // pred_region
    _
  $region21: #{vit_forward.10} parent=0 // pred_fallthru
    _

// kernel: vit_forward.12
$region0: #{vit_forward.12}
  #allocation0 [shape = 'u32[]', space=smem, size = 0x4, offset = 0x4, fixed_abs, tag = 'smem constant byte address 0x4 - core index']
  #allocation1 [shape = 'u32[144,128]{1,0:T(1,128)}', space=vmem, size = 0x12000, scoped, tag = 'internal scratch']
  %s0 = inlined_call_operand.vmem [shape: bf16[2,8,96], index: 0, kind: input, shape index: {}]
  %s1 = inlined_call_operand.vmem [shape: bf16[2,8,32], index: 1, kind: output, shape index: {}]
  %s2 = sld [smem:[#allocation0]]
  $region37: #{vit_forward.12} parent=0
    _
  %s4 = ssub.s32 1, %s2
  %s5 = scalar_select 0, %s4, %s2
  loop: start=0, step=1, limit=4
  $region2: #{vit_forward.12} parent=0 // loop_pre_header
    _
  $region3: #{vit_forward.12} parent=0 // loop_header
    %s7 = sphi 0, %s11
    %p8 = scmp.ge.s32.totalorder %s7, 4
    %s17 = sphi 0, %s19
    %s20 = sphi 0, %s17
    %s21 = sphi 0, %s20
    %s37 = sphi 0, %s21
    %s43 = sphi 0, %s45
    %s46 = sphi 0, %s43
    %s47 = sphi 0, %s46
    %s63 = sphi 0, %s47
  $region4: #{vit_forward.12} parent=0 // loop_header_branch
    %10 = sbr.rel (%p8) target = $region8
  $region5: #{vit_forward.12} parent=0 // loop_body
    %s12 = ssub.s32 %s7, 1
    %s13 = ssub.s32 %s7, 2
    %s14 = sadd.s32 %s7, 1
    %s15 = ssub.s32 %s7, %s14
    %p16 = scmp.eq.s32.totalorder %s15, 0
    %s18 = sadd.s32 %s17, 1
    %s19 = scalar_select %p16, %s17, %s18
    %p22 = pneg %p16
    %p23 = scmp.eq.s32.totalorder %s7, 1
    %p24 = por %p22, %p23
    %p25 = scmp.ne.s32.totalorder %s17, %s20
    %p26 = scmp.eq.s32.totalorder %s7, 0
    %p27 = por %p25, %p26
    %p28 = scmp.ne.s32.totalorder %s17, %s20
    %p29 = scmp.eq.s32.totalorder %s12, 1
    %p30 = por %p28, %p29
    %p31 = scmp.ne.s32.totalorder %s20, %s21
    %p32 = scmp.eq.s32.totalorder %s12, 0
    %p33 = por %p31, %p32
    %p34 = scmp.ne.s32.totalorder %s20, %s21
    %p35 = scmp.eq.s32.totalorder %s13, 1
    %p36 = por %p34, %p35
    %p38 = scmp.ne.s32.totalorder %s21, %s37
    %p39 = scmp.eq.s32.totalorder %s13, 0
    %p40 = por %p38, %p39
    %s41 = ssub.s32 %s7, %s14
    %p42 = scmp.eq.s32.totalorder %s41, 0
    %s44 = sadd.s32 %s43, 1
    %s45 = scalar_select %p42, %s43, %s44
    %p48 = pneg %p42
    %p49 = scmp.eq.s32.totalorder %s7, 1
    %p50 = por %p48, %p49
    %p51 = scmp.ne.s32.totalorder %s43, %s46
    %p52 = scmp.eq.s32.totalorder %s7, 0
    %p53 = por %p51, %p52
    %p54 = scmp.ne.s32.totalorder %s43, %s46
    %p55 = scmp.eq.s32.totalorder %s12, 1
    %p56 = por %p54, %p55
    %p57 = scmp.ne.s32.totalorder %s46, %s47
    %p58 = scmp.eq.s32.totalorder %s12, 0
    %p59 = por %p57, %p58
    %p60 = scmp.ne.s32.totalorder %s46, %s47
    %p61 = scmp.eq.s32.totalorder %s13, 1
    %p62 = por %p60, %p61
    %p64 = scmp.ne.s32.totalorder %s47, %s63
    %p65 = scmp.eq.s32.totalorder %s13, 0
    %p66 = por %p64, %p65
    %p67 = scmp.le.s32.totalorder 1, %s7
    %p68 = scmp.lt.s32.totalorder %s7, 3
    %p69 = pnand %p67, %p68
    %p70 = pneg %p69
    // Predicated region
    $region9: #{vit_forward.12} parent=5 // pred_check
      _
    $region10: #{vit_forward.12} parent=5 // pred_check_branch
      %72 = sbr.rel (%p69) target = $region12
    $region11: #{vit_forward.12} parent=5 // pred_region
      %s73 = ssub.s32 %s7, 1
    $region12: #{vit_forward.12} parent=5 // pred_fallthru
      _
    %p74 = scmp.lt.s32.totalorder %s7, 2
    // Predicated region
    $region13: #{vit_forward.12} parent=5 // pred_check
      %p75 = pneg %p74
    $region14: #{vit_forward.12} parent=5 // pred_check_branch
      %77 = sbr.rel (%p75) target = $region16
    $region15: #{vit_forward.12} parent=5 // pred_region
      // Predicated region
      $region17: #{vit_forward.12} parent=15 // pred_check
        %p78 = pneg %p27
      $region18: #{vit_forward.12} parent=15 // pred_check_branch
        %80 = sbr.rel (%p78) target = $region20
      $region19: #{vit_forward.12} parent=15 // pred_region
        %p81 = scmp.lt.s32.totalorder %s7, 1
        %s82 = scalar_select %p81, %s7, 1
        %s83 = smul.addr %s82, 4
        %s84 = scalar_lea.vmem %s0, %s83
      $region20: #{vit_forward.12} parent=15 // pred_fallthru
        _
    $region16: #{vit_forward.12} parent=5 // pred_fallthru
      _
    %p85 = scmp.le.s32.totalorder 1, %s7
    %p86 = scmp.lt.s32.totalorder %s7, 3
    %p87 = pnand %p85, %p86
    %p88 = pneg %p87
    // Predicated region
    $region21: #{vit_forward.12} parent=5 // pred_check
      _
    $region22: #{vit_forward.12} parent=5 // pred_check_branch
      %90 = sbr.rel (%p87) target = $region24
    $region23: #{vit_forward.12} parent=5 // pred_region
      %s91 = ssub.s32 %s7, 1
      %p92 = scmp.lt.s32.totalorder %s12, 1
      %s93 = scalar_select %p92, %s12, 1
      %s94 = smul.addr %s93, 4
      %s95 = scalar_lea.vmem %s0, %s94
      %p96 = pneg %p33
      %p97 = pneg %p30
      %p98 = pneg %p59
      %p99 = pneg %p56
      %p100 = scmp.lt.s32.totalorder %s12, 1
      %s101 = scalar_select %p100, %s12, 1
      %s102 = smul.addr %s101, 4
      %s103 = scalar_lea.vmem %s1, %s102
      %p104 = scmp.lt.s32.totalorder %s12, 1
      %s105 = scalar_select %p104, %s12, 1
      %s106 = smul.addr %s105, 4
      %s107 = scalar_lea.vmem %s0, %s106
      %p108 = scmp.lt.s32.totalorder %s12, 1
      %s109 = scalar_select %p108, %s12, 1
      %s110 = smul.addr %s109, 4
      %s111 = scalar_lea.vmem %s1, %s110
      %v113 = vlaneseq
      %v114 = vand.u32 %v113, 127
      %v115 = vld [vmem:[%s107] sm:$0xf]
      %v117 = vunpack.c.l.b16 %v115
      %v118 = vpack.c.b16 %v117, %v117
      %119 = vrot.lane.b32.xlu0 %v118, 96
      %v120 = vpop.permute.xlu0 %119
      %vm121 = vcmask 64512
      %v123 = vsel %vm121, %v115, 0
      %v126 = vsel %vm121, %v120, 0
      %128 = vmatprep.subr.bf16.mxu0 0
      %129 = vmatpush1.bf16.xpose.msra.mxu0 %v126
      %130 = vmatprep.subr.bf16.mxu0 0
      %131 = vmatpush1.bf16.xpose.msra.mxu0 0
      %132 = vmatprep.subr.bf16.mxu0 0
      %133 = vmatpush1.bf16.xpose.msra.mxu0 0
      %134 = vmatprep.subr.bf16.mxu0 0
      %135 = vmatpush1.bf16.xpose.msra.mxu0 0
      %136 = vmatprep.subr.bf16.mxu0 0
      %137 = vmatpush1.bf16.xpose.msra.mxu0 0
      %138 = vmatprep.subr.bf16.mxu0 0
      %139 = vmatpush1.bf16.xpose.msra.mxu0 0
      %140 = vmatprep.subr.bf16.mxu0 0
      %141 = vmatpush1.bf16.xpose.msra.mxu0 0
      %142 = vmatprep.subr.bf16.mxu0 0
      %143 = vmatpush1.bf16.xpose.msra.mxu0 0
      %144 = vmatprep.subr.bf16.mxu0 0
      %145 = vmatpush1.bf16.xpose.msra.mxu0 0
      %146 = vmatprep.subr.bf16.mxu0 0
      %147 = vmatpush1.bf16.xpose.msra.mxu0 0
      %148 = vmatprep.subr.bf16.mxu0 0
      %149 = vmatpush1.bf16.xpose.msra.mxu0 0
      %150 = vmatprep.subr.bf16.mxu0 0
      %151 = vmatpush1.bf16.xpose.msra.mxu0 0
      %152 = vmatprep.subr.bf16.mxu0 0
      %153 = vmatpush1.bf16.xpose.msra.mxu0 0
      %154 = vmatprep.subr.bf16.mxu0 0
      %155 = vmatpush1.bf16.xpose.msra.mxu0 0
      %156 = vmatprep.subr.bf16.mxu0 0
      %157 = vmatpush1.bf16.xpose.msra.mxu0 0
      %158 = vmatprep.subr.bf16.mxu0 0
      %159 = vmatpush1.bf16.xpose.msra.mxu0 0
      %160 = vmatprep.mubr.bf16.mxu0 0
      %161 = vmatmul.mubr.bf16.gmra.mrb[0].mxu0 %v123
      %v162 = vpop.f32.mrb[0].mxu0
      %v163 = vadd.f32 0.0, %v162
      %v164 = vpop.f32.mrb[0].mxu0
      %v165 = vpop.f32.mrb[0].mxu0
      %v166 = vpop.f32.mrb[0].mxu0
      %167 = vdwg.mxu0
      %v168 = vmul.f32 %v163, 0.35355338
      %vm169 = vcmp.lt.s32.totalorder %v114, 5
      %v170 = vsel %vm169, %v168, -1e+30
      %v171 = vsel %vm121, %v170, -inf
      %172 = vmax.xlane.f32.xlu0 %v171
      %v173 = vpop.xlane.xlu0 %172
      %v174 = vsub.f32 %v170, %v173
      %v175 = vmul.f32 %v174, 1.442695
      %v176 = vpow.pop %v175
      %v177 = vsel %vm121, %v176, 0.0
      %178 = vadd.xlane.f32.xlu0 %v177
      %v179 = vpop.xlane.xlu0 %178
      %v180 = vrcp.pop %v179
      %v181 = vmul.f32 %v176, %v180
      %v182 = vpack.c.bf16 %v181, %v181
      %183 = vrot.lane.b32.xlu0 %v118, 64
      %v184 = vpop.permute.xlu0 %183
      %v186 = vsel %vm121, %v182, 0
      %vm188 = vcmask 1043456
      %v190 = vsel %vm188, %v184, 0
      %192 = vmatprep.subr.bf16.mxu0 0
      %193 = vmatpush1.bf16.msra.mxu0 %v190
      %194 = vmatprep.subr.bf16.mxu0 0
      %195 = vmatpush1.bf16.msra.mxu0 0
      %196 = vmatprep.subr.bf16.mxu0 0
      %197 = vmatpush1.bf16.msra.mxu0 0
      %198 = vmatprep.subr.bf16.mxu0 0
      %199 = vmatpush1.bf16.msra.mxu0 0
      %200 = vmatprep.subr.bf16.mxu0 0
      %201 = vmatpush1.bf16.msra.mxu0 0
      %202 = vmatprep.subr.bf16.mxu0 0
      %203 = vmatpush1.bf16.msra.mxu0 0
      %204 = vmatprep.subr.bf16.mxu0 0
      %205 = vmatpush1.bf16.msra.mxu0 0
      %206 = vmatprep.subr.bf16.mxu0 0
      %207 = vmatpush1.bf16.msra.mxu0 0
      %208 = vmatprep.subr.bf16.mxu0 0
      %209 = vmatpush1.bf16.msra.mxu0 0
      %210 = vmatprep.subr.bf16.mxu0 0
      %211 = vmatpush1.bf16.msra.mxu0 0
      %212 = vmatprep.subr.bf16.mxu0 0
      %213 = vmatpush1.bf16.msra.mxu0 0
      %214 = vmatprep.subr.bf16.mxu0 0
      %215 = vmatpush1.bf16.msra.mxu0 0
      %216 = vmatprep.subr.bf16.mxu0 0
      %217 = vmatpush1.bf16.msra.mxu0 0
      %218 = vmatprep.subr.bf16.mxu0 0
      %219 = vmatpush1.bf16.msra.mxu0 0
      %220 = vmatprep.subr.bf16.mxu0 0
      %221 = vmatpush1.bf16.msra.mxu0 0
      %222 = vmatprep.subr.bf16.mxu0 0
      %223 = vmatpush1.bf16.msra.mxu0 0
      %224 = vmatprep.mubr.bf16.mxu0 0
      %225 = vmatmul.mubr.bf16.gmra.mrb[0].mxu0 %v186
      %v226 = vpop.f32.mrb[0].mxu0
      %v227 = vadd.f32 0.0, %v226
      %v228 = vpop.f32.mrb[0].mxu0
      %v229 = vpop.f32.mrb[0].mxu0
      %v230 = vpop.f32.mrb[0].mxu0
      %231 = vdwg.mxu0
      %v232 = vpack.c.bf16 %v227, %v227
      %vm233 = vcmask 60416
      %234 = vst.msk [vmem:[%s111] sm:$0xf] %vm233, %v232
      %v235 = vld [vmem:[%s107] sm:$0xf]
      %v237 = vunpack.c.l.b16 %v235
      %v238 = vpack.c.b16 %v237, %v237
      %239 = vrot.lane.b32.xlu0 %v238, 120
      %v240 = vpop.permute.xlu0 %239
      %241 = vrot.lane.b32.xlu0 %v238, 88
      %v242 = vpop.permute.xlu0 %241
      %v244 = vsel %vm121, %v240, 0
      %v247 = vsel %vm121, %v242, 0
      %249 = vmatprep.subr.bf16.mxu0 0
      %250 = vmatpush1.bf16.xpose.msra.mxu0 %v247
      %251 = vmatprep.subr.bf16.mxu0 0
      %252 = vmatpush1.bf16.xpose.msra.mxu0 0
      %253 = vmatprep.subr.bf16.mxu0 0
      %254 = vmatpush1.bf16.xpose.msra.mxu0 0
      %255 = vmatprep.subr.bf16.mxu0 0
      %256 = vmatpush1.bf16.xpose.msra.mxu0 0
      %257 = vmatprep.subr.bf16.mxu0 0
      %258 = vmatpush1.bf16.xpose.msra.mxu0 0
      %259 = vmatprep.subr.bf16.mxu0 0
      %260 = vmatpush1.bf16.xpose.msra.mxu0 0
      %261 = vmatprep.subr.bf16.mxu0 0
      %262 = vmatpush1.bf16.xpose.msra.mxu0 0
      %263 = vmatprep.subr.bf16.mxu0 0
      %264 = vmatpush1.bf16.xpose.msra.mxu0 0
      %265 = vmatprep.subr.bf16.mxu0 0
      %266 = vmatpush1.bf16.xpose.msra.mxu0 0
      %267 = vmatprep.subr.bf16.mxu0 0
      %268 = vmatpush1.bf16.xpose.msra.mxu0 0
      %269 = vmatprep.subr.bf16.mxu0 0
      %270 = vmatpush1.bf16.xpose.msra.mxu0 0
      %271 = vmatprep.subr.bf16.mxu0 0
      %272 = vmatpush1.bf16.xpose.msra.mxu0 0
      %273 = vmatprep.subr.bf16.mxu0 0
      %274 = vmatpush1.bf16.xpose.msra.mxu0 0
      %275 = vmatprep.subr.bf16.mxu0 0
      %276 = vmatpush1.bf16.xpose.msra.mxu0 0
      %277 = vmatprep.subr.bf16.mxu0 0
      %278 = vmatpush1.bf16.xpose.msra.mxu0 0
      %279 = vmatprep.subr.bf16.mxu0 0
      %280 = vmatpush1.bf16.xpose.msra.mxu0 0
      %281 = vmatprep.mubr.bf16.mxu0 0
      %282 = vmatmul.mubr.bf16.gmra.mrb[0].mxu0 %v244
      %v283 = vpop.f32.mrb[0].mxu0
      %v284 = vadd.f32 0.0, %v283
      %v285 = vpop.f32.mrb[0].mxu0
      %v286 = vpop.f32.mrb[0].mxu0
      %v287 = vpop.f32.mrb[0].mxu0
      %288 = vdwg.mxu0
      %v289 = vmul.f32 %v284, 0.35355338
      %v290 = vsel %vm169, %v289, -1e+30
      %v291 = vsel %vm121, %v290, -inf
      %292 = vmax.xlane.f32.xlu0 %v291
      %v293 = vpop.xlane.xlu0 %292
      %v294 = vsub.f32 %v290, %v293
      %v295 = vmul.f32 %v294, 1.442695
      %v296 = vpow.pop %v295
      %v297 = vsel %vm121, %v296, 0.0
      %298 = vadd.xlane.f32.xlu0 %v297
      %v299 = vpop.xlane.xlu0 %298
      %v300 = vrcp.pop %v299
      %v301 = vmul.f32 %v296, %v300
      %v302 = vpack.c.bf16 %v301, %v301
      %303 = vrot.lane.b32.xlu0 %v238, 56
      %v304 = vpop.permute.xlu0 %303
      %v306 = vsel %vm121, %v302, 0
      %v309 = vsel %vm188, %v304, 0
      %311 = vmatprep.subr.bf16.mxu0 0
      %312 = vmatpush1.bf16.msra.mxu0 %v309
      %313 = vmatprep.subr.bf16.mxu0 0
      %314 = vmatpush1.bf16.msra.mxu0 0
      %315 = vmatprep.subr.bf16.mxu0 0
      %316 = vmatpush1.bf16.msra.mxu0 0
      %317 = vmatprep.subr.bf16.mxu0 0
      %318 = vmatpush1.bf16.msra.mxu0 0
      %319 = vmatprep.subr.bf16.mxu0 0
      %320 = vmatpush1.bf16.msra.mxu0 0
      %321 = vmatprep.subr.bf16.mxu0 0
      %322 = vmatpush1.bf16.msra.mxu0 0
      %323 = vmatprep.subr.bf16.mxu0 0
      %324 = vmatpush1.bf16.msra.mxu0 0
      %325 = vmatprep.subr.bf16.mxu0 0
      %326 = vmatpush1.bf16.msra.mxu0 0
      %327 = vmatprep.subr.bf16.mxu0 0
      %328 = vmatpush1.bf16.msra.mxu0 0
      %329 = vmatprep.subr.bf16.mxu0 0
      %330 = vmatpush1.bf16.msra.mxu0 0
      %331 = vmatprep.subr.bf16.mxu0 0
      %332 = vmatpush1.bf16.msra.mxu0 0
      %333 = vmatprep.subr.bf16.mxu0 0
      %334 = vmatpush1.bf16.msra.mxu0 0
      %335 = vmatprep.subr.bf16.mxu0 0
      %336 = vmatpush1.bf16.msra.mxu0 0
      %337 = vmatprep.subr.bf16.mxu0 0
      %338 = vmatpush1.bf16.msra.mxu0 0
      %339 = vmatprep.subr.bf16.mxu0 0
      %340 = vmatpush1.bf16.msra.mxu0 0
      %341 = vmatprep.subr.bf16.mxu0 0
      %342 = vmatpush1.bf16.msra.mxu0 0
      %343 = vmatprep.mubr.bf16.mxu0 0
      %344 = vmatmul.mubr.bf16.gmra.mrb[0].mxu0 %v306
      %v345 = vpop.f32.mrb[0].mxu0
      %v346 = vadd.f32 0.0, %v345
      %v347 = vpop.f32.mrb[0].mxu0
      %v348 = vpop.f32.mrb[0].mxu0
      %v349 = vpop.f32.mrb[0].mxu0
      %350 = vdwg.mxu0
      %v351 = vpack.c.bf16 %v346, %v346
      %v353 = vunpack.c.l.b16 %v351
      %v354 = vpack.c.b16 %v353, %v353
      %355 = vrot.lane.b32.xlu0 %v354, 8
      %v356 = vpop.permute.xlu0 %355
      %vm358 = vcmask 126016
      %359 = vst.msk [vmem:[%s111] sm:$0xf] %vm358, %v356
      %v360 = vld [vmem:[%s107] sm:$0xf]
      %v362 = vunpack.c.l.b16 %v360
      %v363 = vpack.c.b16 %v362, %v362
      %364 = vrot.lane.b32.xlu0 %v363, 112
      %v365 = vpop.permute.xlu0 %364
      %366 = vrot.lane.b32.xlu0 %v363, 80
      %v367 = vpop.permute.xlu0 %366
      %v369 = vsel %vm121, %v365, 0
      %v372 = vsel %vm121, %v367, 0
      %374 = vmatprep.subr.bf16.mxu0 0
      %375 = vmatpush1.bf16.xpose.msra.mxu0 %v372
      %376 = vmatprep.subr.bf16.mxu0 0
      %377 = vmatpush1.bf16.xpose.msra.mxu0 0
      %378 = vmatprep.subr.bf16.mxu0 0
      %379 = vmatpush1.bf16.xpose.msra.mxu0 0
      %380 = vmatprep.subr.bf16.mxu0 0
      %381 = vmatpush1.bf16.xpose.msra.mxu0 0
      %382 = vmatprep.subr.bf16.mxu0 0
      %383 = vmatpush1.bf16.xpose.msra.mxu0 0
      %384 = vmatprep.subr.bf16.mxu0 0
      %385 = vmatpush1.bf16.xpose.msra.mxu0 0
      %386 = vmatprep.subr.bf16.mxu0 0
      %387 = vmatpush1.bf16.xpose.msra.mxu0 0
      %388 = vmatprep.subr.bf16.mxu0 0
      %389 = vmatpush1.bf16.xpose.msra.mxu0 0
      %390 = vmatprep.subr.bf16.mxu0 0
      %391 = vmatpush1.bf16.xpose.msra.mxu0 0
      %392 = vmatprep.subr.bf16.mxu0 0
      %393 = vmatpush1.bf16.xpose.msra.mxu0 0
      %394 = vmatprep.subr.bf16.mxu0 0
      %395 = vmatpush1.bf16.xpose.msra.mxu0 0
      %396 = vmatprep.subr.bf16.mxu0 0
      %397 = vmatpush1.bf16.xpose.msra.mxu0 0
      %398 = vmatprep.subr.bf16.mxu0 0
      %399 = vmatpush1.bf16.xpose.msra.mxu0 0
      %400 = vmatprep.subr.bf16.mxu0 0
      %401 = vmatpush1.bf16.xpose.msra.mxu0 0
      %402 = vmatprep.subr.bf16.mxu0 0
      %403 = vmatpush1.bf16.xpose.msra.mxu0 0
      %404 = vmatprep.subr.bf16.mxu0 0
      %405 = vmatpush1.bf16.xpose.msra.mxu0 0
      %406 = vmatprep.mubr.bf16.mxu0 0
      %407 = vmatmul.mubr.bf16.gmra.mrb[0].mxu0 %v369
      %v408 = vpop.f32.mrb[0].mxu0
      %v409 = vadd.f32 0.0, %v408
      %v410 = vpop.f32.mrb[0].mxu0
      %v411 = vpop.f32.mrb[0].mxu0
      %v412 = vpop.f32.mrb[0].mxu0
      %413 = vdwg.mxu0
      %v414 = vmul.f32 %v409, 0.35355338
      %v415 = vsel %vm169, %v414, -1e+30
      %v416 = vsel %vm121, %v415, -inf
      %417 = vmax.xlane.f32.xlu0 %v416
      %v418 = vpop.xlane.xlu0 %417
      %v419 = vsub.f32 %v415, %v418
      %v420 = vmul.f32 %v419, 1.442695
      %v421 = vpow.pop %v420
      %v422 = vsel %vm121, %v421, 0.0
      %423 = vadd.xlane.f32.xlu0 %v422
      %v424 = vpop.xlane.xlu0 %423
      %v425 = vrcp.pop %v424
      %v426 = vmul.f32 %v421, %v425
      %v427 = vpack.c.bf16 %v426, %v426
      %428 = vrot.lane.b32.xlu0 %v363, 48
      %v429 = vpop.permute.xlu0 %428
      %v431 = vsel %vm121, %v427, 0
      %v434 = vsel %vm188, %v429, 0
      %436 = vmatprep.subr.bf16.mxu0 0
      %437 = vmatpush1.bf16.msra.mxu0 %v434
      %438 = vmatprep.subr.bf16.mxu0 0
      %439 = vmatpush1.bf16.msra.mxu0 0
      %440 = vmatprep.subr.bf16.mxu0 0
      %441 = vmatpush1.bf16.msra.mxu0 0
      %442 = vmatprep.subr.bf16.mxu0 0
      %443 = vmatpush1.bf16.msra.mxu0 0
      %444 = vmatprep.subr.bf16.mxu0 0
      %445 = vmatpush1.bf16.msra.mxu0 0
      %446 = vmatprep.subr.bf16.mxu0 0
      %447 = vmatpush1.bf16.msra.mxu0 0
      %448 = vmatprep.subr.bf16.mxu0 0
      %449 = vmatpush1.bf16.msra.mxu0 0
      %450 = vmatprep.subr.bf16.mxu0 0
      %451 = vmatpush1.bf16.msra.mxu0 0
      %452 = vmatprep.subr.bf16.mxu0 0
      %453 = vmatpush1.bf16.msra.mxu0 0
      %454 = vmatprep.subr.bf16.mxu0 0
      %455 = vmatpush1.bf16.msra.mxu0 0
      %456 = vmatprep.subr.bf16.mxu0 0
      %457 = vmatpush1.bf16.msra.mxu0 0
      %458 = vmatprep.subr.bf16.mxu0 0
      %459 = vmatpush1.bf16.msra.mxu0 0
      %460 = vmatprep.subr.bf16.mxu0 0
      %461 = vmatpush1.bf16.msra.mxu0 0
      %462 = vmatprep.subr.bf16.mxu0 0
      %463 = vmatpush1.bf16.msra.mxu0 0
      %464 = vmatprep.subr.bf16.mxu0 0
      %465 = vmatpush1.bf16.msra.mxu0 0
      %466 = vmatprep.subr.bf16.mxu0 0
      %467 = vmatpush1.bf16.msra.mxu0 0
      %468 = vmatprep.mubr.bf16.mxu0 0
      %469 = vmatmul.mubr.bf16.gmra.mrb[0].mxu0 %v431
      %v470 = vpop.f32.mrb[0].mxu0
      %v471 = vadd.f32 0.0, %v470
      %v472 = vpop.f32.mrb[0].mxu0
      %v473 = vpop.f32.mrb[0].mxu0
      %v474 = vpop.f32.mrb[0].mxu0
      %475 = vdwg.mxu0
      %v476 = vpack.c.bf16 %v471, %v471
      %v478 = vunpack.c.l.b16 %v476
      %v479 = vpack.c.b16 %v478, %v478
      %480 = vrot.lane.b32.xlu0 %v479, 16
      %v481 = vpop.permute.xlu0 %480
      %vm483 = vcmask 191616
      %484 = vst.msk [vmem:[%s111] sm:$0xf] %vm483, %v481
      %v485 = vld [vmem:[%s107] sm:$0xf]
      %v487 = vunpack.c.l.b16 %v485
      %v488 = vpack.c.b16 %v487, %v487
      %489 = vrot.lane.b32.xlu0 %v488, 104
      %v490 = vpop.permute.xlu0 %489
      %491 = vrot.lane.b32.xlu0 %v488, 72
      %v492 = vpop.permute.xlu0 %491
      %v494 = vsel %vm121, %v490, 0
      %v497 = vsel %vm121, %v492, 0
      %499 = vmatprep.subr.bf16.mxu0 0
      %500 = vmatpush1.bf16.xpose.msra.mxu0 %v497
      %501 = vmatprep.subr.bf16.mxu0 0
      %502 = vmatpush1.bf16.xpose.msra.mxu0 0
      %503 = vmatprep.subr.bf16.mxu0 0
      %504 = vmatpush1.bf16.xpose.msra.mxu0 0
      %505 = vmatprep.subr.bf16.mxu0 0
      %506 = vmatpush1.bf16.xpose.msra.mxu0 0
      %507 = vmatprep.subr.bf16.mxu0 0
      %508 = vmatpush1.bf16.xpose.msra.mxu0 0
      %509 = vmatprep.subr.bf16.mxu0 0
      %510 = vmatpush1.bf16.xpose.msra.mxu0 0
      %511 = vmatprep.subr.bf16.mxu0 0
      %512 = vmatpush1.bf16.xpose.msra.mxu0 0
      %513 = vmatprep.subr.bf16.mxu0 0
      %514 = vmatpush1.bf16.xpose.msra.mxu0 0
      %515 = vmatprep.subr.bf16.mxu0 0
      %516 = vmatpush1.bf16.xpose.msra.mxu0 0
      %517 = vmatprep.subr.bf16.mxu0 0
      %518 = vmatpush1.bf16.xpose.msra.mxu0 0
      %519 = vmatprep.subr.bf16.mxu0 0
      %520 = vmatpush1.bf16.xpose.msra.mxu0 0
      %521 = vmatprep.subr.bf16.mxu0 0
      %522 = vmatpush1.bf16.xpose.msra.mxu0 0
      %523 = vmatprep.subr.bf16.mxu0 0
      %524 = vmatpush1.bf16.xpose.msra.mxu0 0
      %525 = vmatprep.subr.bf16.mxu0 0
      %526 = vmatpush1.bf16.xpose.msra.mxu0 0
      %527 = vmatprep.subr.bf16.mxu0 0
      %528 = vmatpush1.bf16.xpose.msra.mxu0 0
      %529 = vmatprep.subr.bf16.mxu0 0
      %530 = vmatpush1.bf16.xpose.msra.mxu0 0
      %531 = vmatprep.mubr.bf16.mxu0 0
      %532 = vmatmul.mubr.bf16.gmra.mrb[0].mxu0 %v494
      %v533 = vpop.f32.mrb[0].mxu0
      %v534 = vadd.f32 0.0, %v533
      %v535 = vpop.f32.mrb[0].mxu0
      %v536 = vpop.f32.mrb[0].mxu0
      %v537 = vpop.f32.mrb[0].mxu0
      %538 = vdwg.mxu0
      %v539 = vmul.f32 %v534, 0.35355338
      %v540 = vsel %vm169, %v539, -1e+30
      %v541 = vsel %vm121, %v540, -inf
      %542 = vmax.xlane.f32.xlu0 %v541
      %v543 = vpop.xlane.xlu0 %542
      %v544 = vsub.f32 %v540, %v543
      %v545 = vmul.f32 %v544, 1.442695
      %v546 = vpow.pop %v545
      %v547 = vsel %vm121, %v546, 0.0
      %548 = vadd.xlane.f32.xlu0 %v547
      %v549 = vpop.xlane.xlu0 %548
      %v550 = vrcp.pop %v549
      %v551 = vmul.f32 %v546, %v550
      %v552 = vpack.c.bf16 %v551, %v551
      %553 = vrot.lane.b32.xlu0 %v488, 40
      %v554 = vpop.permute.xlu0 %553
      %v556 = vsel %vm121, %v552, 0
      %v559 = vsel %vm188, %v554, 0
      %561 = vmatprep.subr.bf16.mxu0 0
      %562 = vmatpush1.bf16.msra.mxu0 %v559
      %563 = vmatprep.subr.bf16.mxu0 0
      %564 = vmatpush1.bf16.msra.mxu0 0
      %565 = vmatprep.subr.bf16.mxu0 0
      %566 = vmatpush1.bf16.msra.mxu0 0
      %567 = vmatprep.subr.bf16.mxu0 0
      %568 = vmatpush1.bf16.msra.mxu0 0
      %569 = vmatprep.subr.bf16.mxu0 0
      %570 = vmatpush1.bf16.msra.mxu0 0
      %571 = vmatprep.subr.bf16.mxu0 0
      %572 = vmatpush1.bf16.msra.mxu0 0
      %573 = vmatprep.subr.bf16.mxu0 0
      %574 = vmatpush1.bf16.msra.mxu0 0
      %575 = vmatprep.subr.bf16.mxu0 0
      %576 = vmatpush1.bf16.msra.mxu0 0
      %577 = vmatprep.subr.bf16.mxu0 0
      %578 = vmatpush1.bf16.msra.mxu0 0
      %579 = vmatprep.subr.bf16.mxu0 0
      %580 = vmatpush1.bf16.msra.mxu0 0
      %581 = vmatprep.subr.bf16.mxu0 0
      %582 = vmatpush1.bf16.msra.mxu0 0
      %583 = vmatprep.subr.bf16.mxu0 0
      %584 = vmatpush1.bf16.msra.mxu0 0
      %585 = vmatprep.subr.bf16.mxu0 0
      %586 = vmatpush1.bf16.msra.mxu0 0
      %587 = vmatprep.subr.bf16.mxu0 0
      %588 = vmatpush1.bf16.msra.mxu0 0
      %589 = vmatprep.subr.bf16.mxu0 0
      %590 = vmatpush1.bf16.msra.mxu0 0
      %591 = vmatprep.subr.bf16.mxu0 0
      %592 = vmatpush1.bf16.msra.mxu0 0
      %593 = vmatprep.mubr.bf16.mxu0 0
      %594 = vmatmul.mubr.bf16.gmra.mrb[0].mxu0 %v556
      %v595 = vpop.f32.mrb[0].mxu0
      %v596 = vadd.f32 0.0, %v595
      %v597 = vpop.f32.mrb[0].mxu0
      %v598 = vpop.f32.mrb[0].mxu0
      %v599 = vpop.f32.mrb[0].mxu0
      %600 = vdwg.mxu0
      %v601 = vpack.c.bf16 %v596, %v596
      %v603 = vunpack.c.l.b16 %v601
      %v604 = vpack.c.b16 %v603, %v603
      %605 = vrot.lane.b32.xlu0 %v604, 24
      %v606 = vpop.permute.xlu0 %605
      %vm608 = vcmask 257216
      %609 = vst.msk [vmem:[%s111] sm:$0xf] %vm608, %v606
      %p610 = scmp.lt.s32.totalorder %s12, 1
      %s611 = scalar_select %p610, %s12, 1
      %s612 = smul.addr %s611, 4
      %s613 = scalar_lea.vmem %s1, %s612
      // Predicated region
      $region25: #{vit_forward.12} parent=23 // pred_check
        %p614 = pneg %p56
      $region26: #{vit_forward.12} parent=23 // pred_check_branch
        %616 = sbr.rel (%p614) target = $region28
      $region27: #{vit_forward.12} parent=23 // pred_region
        _
      $region28: #{vit_forward.12} parent=23 // pred_fallthru
        _
    $region24: #{vit_forward.12} parent=5 // pred_fallthru
      _
    %p617 = scmp.le.s32.totalorder 2, %s7
    // Predicated region
    $region29: #{vit_forward.12} parent=5 // pred_check
      %p618 = pneg %p617
    $region30: #{vit_forward.12} parent=5 // pred_check_branch
      %620 = sbr.rel (%p618) target = $region32
    $region31: #{vit_forward.12} parent=5 // pred_region
      %s621 = ssub.s32 %s7, 2
      // Predicated region
      $region33: #{vit_forward.12} parent=31 // pred_check
        %p622 = pneg %p62
      $region34: #{vit_forward.12} parent=31 // pred_check_branch
        %624 = sbr.rel (%p622) target = $region36
      $region35: #{vit_forward.12} parent=31 // pred_region
        %p625 = scmp.lt.s32.totalorder %s13, 1
        %s626 = scalar_select %p625, %s13, 1
        %s627 = smul.addr %s626, 4
        %s628 = scalar_lea.vmem %s1, %s627
      $region36: #{vit_forward.12} parent=31 // pred_fallthru
        _
    $region32: #{vit_forward.12} parent=5 // pred_fallthru
      _
  $region6: #{vit_forward.12} parent=0 // loop_footer
    %s11 = sadd.s32 1, %s7
  $region7: #{vit_forward.12} parent=0 // loop_footer_branch
    %6 = sbr.rel target = $region3
  $region8: #{vit_forward.12} parent=0 // loop_exit
    _

// kernel: vit_forward.19
$region0: #{vit_forward.19}
  #allocation0 [shape = 'u32[]', space=smem, size = 0x4, offset = 0x4, fixed_abs, tag = 'smem constant byte address 0x4 - core index']
  #allocation1 [shape = 'u32[144,128]{1,0:T(1,128)}', space=vmem, size = 0x12000, scoped, tag = 'internal scratch']
  %s0 = inlined_call_operand.vmem [shape: f32[16,32], index: 0, kind: input, shape index: {}]
  %s1 = inlined_call_operand.vmem [shape: f32[1,32], index: 1, kind: input, shape index: {}]
  %s2 = inlined_call_operand.vmem [shape: f32[1,32], index: 2, kind: input, shape index: {}]
  %s3 = inlined_call_operand.vmem [shape: f32[16,32], index: 3, kind: output, shape index: {}]
  %s4 = sld [smem:[#allocation0]]
  $region22: #{vit_forward.19} parent=0
    _
  %s6 = ssub.s32 1, %s4
  %s7 = scalar_select 0, %s6, %s4
  // Predicated region
  $region2: #{vit_forward.19} parent=0 // pred_check
    _
  $region3: #{vit_forward.19} parent=0 // pred_check_branch
    %9 = sbr.rel (0) target = $region5
  $region4: #{vit_forward.19} parent=0 // pred_region
    _
  $region5: #{vit_forward.19} parent=0 // pred_fallthru
    _
  // Predicated region
  $region6: #{vit_forward.19} parent=0 // pred_check
    _
  $region7: #{vit_forward.19} parent=0 // pred_check_branch
    %11 = sbr.rel (0) target = $region9
  $region8: #{vit_forward.19} parent=0 // pred_region
    _
  $region9: #{vit_forward.19} parent=0 // pred_fallthru
    _
  // Predicated region
  $region10: #{vit_forward.19} parent=0 // pred_check
    _
  $region11: #{vit_forward.19} parent=0 // pred_check_branch
    %13 = sbr.rel (0) target = $region13
  $region12: #{vit_forward.19} parent=0 // pred_region
    _
  $region13: #{vit_forward.19} parent=0 // pred_fallthru
    _
  %v14 = vld [vmem:[%s0] sm:$0xff]
  %v15 = vld [vmem:[%s0 + $0x8] sm:$0xff]
  %v16 = vld [vmem:[%s1] sm:$0x1]
  %v17 = vld [vmem:[%s2] sm:$0x1]
  %vm18 = vcmask 261120
  %v19 = vsel %vm18, %v14, 0.0
  %20 = vadd.xlane.f32.xlu0 %v19
  %v21 = vpop.xlane.xlu0 %20
  %v22 = vsel %vm18, %v15, 0.0
  %23 = vadd.xlane.f32.xlu0 %v22
  %v24 = vpop.xlane.xlu0 %23
  %v25 = vrcp.pop 32.0
  %v26 = vmul.f32 %v21, %v25
  %v27 = vmul.f32 %v24, %v25
  %v28 = vsub.f32 %v14, %v26
  %v29 = vsub.f32 %v15, %v27
  %v30 = vmul.f32 %v28, %v28
  %v31 = vmul.f32 %v29, %v29
  %v32 = vsel %vm18, %v30, 0.0
  %33 = vadd.xlane.f32.xlu0 %v32
  %v34 = vpop.xlane.xlu0 %33
  %v35 = vsel %vm18, %v31, 0.0
  %36 = vadd.xlane.f32.xlu0 %v35
  %v37 = vpop.xlane.xlu0 %36
  %v38 = vmul.f32 %v34, %v25
  %v39 = vmul.f32 %v37, %v25
  %v40 = vadd.f32 %v38, 1e-05
  %v41 = vadd.f32 %v39, 1e-05
  %v42 = vrsqrt.pop %v40
  %v43 = vrsqrt.pop %v41
  %v44 = vmul.f32 %v28, %v42
  %v45 = vmul.f32 %v29, %v43
  %v47 = vlaneseq
  %v48 = vshrl.u32 %v47, 7
  %v49 = vsub.s32 0, %v48
  %v50 = vrot.slane %v16, %v49
  %v52 = vmul.f32 %v44, %v50
  %v53 = vmul.f32 %v45, %v50
  %v55 = vlaneseq
  %v56 = vshrl.u32 %v55, 7
  %v57 = vsub.s32 0, %v56
  %v58 = vrot.slane %v17, %v57
  %v60 = vadd.f32 %v52, %v58
  %v61 = vadd.f32 %v53, %v58
  %62 = vst.msk [vmem:[%s3] sm:$0xff] %vm18, %v60
  %63 = vst.msk [vmem:[%s3 + $0x8] sm:$0xff] %vm18, %v61
  // Predicated region
  $region14: #{vit_forward.19} parent=0 // pred_check
    _
  $region15: #{vit_forward.19} parent=0 // pred_check_branch
    %65 = sbr.rel (0) target = $region17
  $region16: #{vit_forward.19} parent=0 // pred_region
    _
  $region17: #{vit_forward.19} parent=0 // pred_fallthru
    _
  // Predicated region
  $region18: #{vit_forward.19} parent=0 // pred_check
    _
  $region19: #{vit_forward.19} parent=0 // pred_check_branch
    %67 = sbr.rel (0) target = $region21
  $region20: #{vit_forward.19} parent=0 // pred_region
    _
  $region21: #{vit_forward.19} parent=0 // pred_fallthru
    _

// kernel: vit_forward.14
$region0: #{vit_forward.14}
  #allocation0 [shape = 'u32[]', space=smem, size = 0x4, offset = 0x4, fixed_abs, tag = 'smem constant byte address 0x4 - core index']
  #allocation1 [shape = 'u32[144,128]{1,0:T(1,128)}', space=vmem, size = 0x12000, scoped, tag = 'internal scratch']
  %s0 = inlined_call_operand.vmem [shape: f32[16,32], index: 0, kind: input, shape index: {}]
  %s1 = inlined_call_operand.vmem [shape: f32[1,32], index: 1, kind: input, shape index: {}]
  %s2 = inlined_call_operand.vmem [shape: f32[1,32], index: 2, kind: input, shape index: {}]
  %s3 = inlined_call_operand.vmem [shape: bf16[32,128], index: 3, kind: input, shape index: {}]
  %s4 = inlined_call_operand.vmem [shape: f32[1,128], index: 4, kind: input, shape index: {}]
  %s5 = inlined_call_operand.vmem [shape: bf16[128,32], index: 5, kind: input, shape index: {}]
  %s6 = inlined_call_operand.vmem [shape: f32[1,32], index: 6, kind: input, shape index: {}]
  %s7 = inlined_call_operand.vmem [shape: f32[16,32], index: 7, kind: output, shape index: {}]
  %s8 = sld [smem:[#allocation0]]
  $region38: #{vit_forward.14} parent=0
    _
  %s10 = ssub.s32 1, %s8
  %s11 = scalar_select 0, %s10, %s8
  // Predicated region
  $region2: #{vit_forward.14} parent=0 // pred_check
    _
  $region3: #{vit_forward.14} parent=0 // pred_check_branch
    %13 = sbr.rel (0) target = $region5
  $region4: #{vit_forward.14} parent=0 // pred_region
    _
  $region5: #{vit_forward.14} parent=0 // pred_fallthru
    _
  // Predicated region
  $region6: #{vit_forward.14} parent=0 // pred_check
    _
  $region7: #{vit_forward.14} parent=0 // pred_check_branch
    %15 = sbr.rel (0) target = $region9
  $region8: #{vit_forward.14} parent=0 // pred_region
    _
  $region9: #{vit_forward.14} parent=0 // pred_fallthru
    _
  // Predicated region
  $region10: #{vit_forward.14} parent=0 // pred_check
    _
  $region11: #{vit_forward.14} parent=0 // pred_check_branch
    %17 = sbr.rel (0) target = $region13
  $region12: #{vit_forward.14} parent=0 // pred_region
    _
  $region13: #{vit_forward.14} parent=0 // pred_fallthru
    _
  // Predicated region
  $region14: #{vit_forward.14} parent=0 // pred_check
    _
  $region15: #{vit_forward.14} parent=0 // pred_check_branch
    %19 = sbr.rel (0) target = $region17
  $region16: #{vit_forward.14} parent=0 // pred_region
    _
  $region17: #{vit_forward.14} parent=0 // pred_fallthru
    _
  // Predicated region
  $region18: #{vit_forward.14} parent=0 // pred_check
    _
  $region19: #{vit_forward.14} parent=0 // pred_check_branch
    %21 = sbr.rel (0) target = $region21
  $region20: #{vit_forward.14} parent=0 // pred_region
    _
  $region21: #{vit_forward.14} parent=0 // pred_fallthru
    _
  // Predicated region
  $region22: #{vit_forward.14} parent=0 // pred_check
    _
  $region23: #{vit_forward.14} parent=0 // pred_check_branch
    %23 = sbr.rel (0) target = $region25
  $region24: #{vit_forward.14} parent=0 // pred_region
    _
  $region25: #{vit_forward.14} parent=0 // pred_fallthru
    _
  // Predicated region
  $region26: #{vit_forward.14} parent=0 // pred_check
    _
  $region27: #{vit_forward.14} parent=0 // pred_check_branch
    %25 = sbr.rel (0) target = $region29
  $region28: #{vit_forward.14} parent=0 // pred_region
    _
  $region29: #{vit_forward.14} parent=0 // pred_fallthru
    _
  %v27 = vld [vmem:[%s0] sm:$0xff]
  %v28 = vld [vmem:[%s0 + $0x8] sm:$0xff]
  %v29 = vld [vmem:[%s1] sm:$0x1]
  %v30 = vld [vmem:[%s2] sm:$0x1]
  %vm31 = vcmask 261120
  %v32 = vsel %vm31, %v27, 0.0
  %33 = vadd.xlane.f32.xlu0 %v32
  %v34 = vpop.xlane.xlu0 %33
  %v35 = vsel %vm31, %v28, 0.0
  %36 = vadd.xlane.f32.xlu0 %v35
  %v37 = vpop.xlane.xlu0 %36
  %v38 = vrcp.pop 32.0
  %v39 = vmul.f32 %v34, %v38
  %v40 = vmul.f32 %v37, %v38
  %v41 = vsub.f32 %v27, %v39
  %v42 = vsub.f32 %v28, %v40
  %v43 = vmul.f32 %v41, %v41
  %v44 = vmul.f32 %v42, %v42
  %v45 = vsel %vm31, %v43, 0.0
  %46 = vadd.xlane.f32.xlu0 %v45
  %v47 = vpop.xlane.xlu0 %46
  %v48 = vsel %vm31, %v44, 0.0
  %49 = vadd.xlane.f32.xlu0 %v48
  %v50 = vpop.xlane.xlu0 %49
  %v51 = vmul.f32 %v47, %v38
  %v52 = vmul.f32 %v50, %v38
  %v53 = vadd.f32 %v51, 1e-05
  %v54 = vadd.f32 %v52, 1e-05
  %v55 = vrsqrt.pop %v53
  %v56 = vrsqrt.pop %v54
  %v57 = vmul.f32 %v41, %v55
  %v58 = vmul.f32 %v42, %v56
  %v60 = vlaneseq
  %v61 = vshrl.u32 %v60, 7
  %v62 = vsub.s32 0, %v61
  %v63 = vrot.slane %v29, %v62
  %v65 = vmul.f32 %v57, %v63
  %v66 = vmul.f32 %v58, %v63
  %v68 = vlaneseq
  %v69 = vshrl.u32 %v68, 7
  %v70 = vsub.s32 0, %v69
  %v71 = vrot.slane %v30, %v70
  %v73 = vadd.f32 %v65, %v71
  %v74 = vadd.f32 %v66, %v71
  %v75 = vpack.c.bf16 %v74, %v73
  %v76 = vld [vmem:[%s6] sm:$0x1]
  %v78 = vlaneseq
  %v79 = vshrl.u32 %v78, 7
  %v80 = vsub.s32 0, %v79
  %v81 = vrot.slane %v76, %v80
  %v83 = vadd.f32 %v27, %v81
  %v84 = vadd.f32 %v28, %v81
  %v85 = vld [vmem:[%s3] sm:$0xf]
  %v86 = vld [vmem:[%s3 + $0x4] sm:$0xf]
  %v87 = vld [vmem:[%s3 + $0x8] sm:$0xf]
  %v88 = vld [vmem:[%s3 + $0xc] sm:$0xf]
  %v89 = vld [vmem:[%s4] sm:$0x1]
  %v91 = vlaneseq
  %v92 = vshrl.u32 %v91, 7
  %v93 = vsub.s32 0, %v92
  %v94 = vrot.slane %v89, %v93
  %v100 = vunpack.c.l.b16 %v85
  %v101 = vunpack.c.l.b16 %v86
  %v102 = vunpack.c.l.b16 %v87
  %v103 = vunpack.c.l.b16 %v88
  %v104 = vpack.c.b16 %v101, %v100
  %v105 = vpack.c.b16 %v103, %v102
  %v109 = vsel %vm31, %v75, 0
  %111 = vmatprep.subr.bf16.mxu0 0
  %112 = vmatpush1.bf16.msra.mxu0 %v104
  %113 = vmatprep.subr.bf16.mxu0 0
  %114 = vmatpush1.bf16.msra.mxu0 %v105
  %115 = vmatprep.subr.bf16.mxu0 0
  %116 = vmatpush1.bf16.msra.mxu0 0
  %117 = vmatprep.subr.bf16.mxu0 0
  %118 = vmatpush1.bf16.msra.mxu0 0
  %119 = vmatprep.subr.bf16.mxu0 0
  %120 = vmatpush1.bf16.msra.mxu0 0
  %121 = vmatprep.subr.bf16.mxu0 0
  %122 = vmatpush1.bf16.msra.mxu0 0
  %123 = vmatprep.subr.bf16.mxu0 0
  %124 = vmatpush1.bf16.msra.mxu0 0
  %125 = vmatprep.subr.bf16.mxu0 0
  %126 = vmatpush1.bf16.msra.mxu0 0
  %127 = vmatprep.subr.bf16.mxu0 0
  %128 = vmatpush1.bf16.msra.mxu0 0
  %129 = vmatprep.subr.bf16.mxu0 0
  %130 = vmatpush1.bf16.msra.mxu0 0
  %131 = vmatprep.subr.bf16.mxu0 0
  %132 = vmatpush1.bf16.msra.mxu0 0
  %133 = vmatprep.subr.bf16.mxu0 0
  %134 = vmatpush1.bf16.msra.mxu0 0
  %135 = vmatprep.subr.bf16.mxu0 0
  %136 = vmatpush1.bf16.msra.mxu0 0
  %137 = vmatprep.subr.bf16.mxu0 0
  %138 = vmatpush1.bf16.msra.mxu0 0
  %139 = vmatprep.subr.bf16.mxu0 0
  %140 = vmatpush1.bf16.msra.mxu0 0
  %141 = vmatprep.subr.bf16.mxu0 0
  %142 = vmatpush1.bf16.msra.mxu0 0
  %143 = vmatprep.mubr.bf16.mxu0 0
  %144 = vmatmul.mubr.bf16.gmra.mrb[0].mxu0 %v109
  %v145 = vpop.f32.mrb[0].mxu0
  %v146 = vadd.f32 %v94, %v145
  %v147 = vpop.f32.mrb[0].mxu0
  %v148 = vpop.f32.mrb[0].mxu0
  %v149 = vadd.f32 %v94, %v148
  %v150 = vpop.f32.mrb[0].mxu0
  %151 = vdwg.mxu0
  %v152 = vmul.f32 %v146, 0.5
  %v153 = vmul.f32 %v149, 0.5
  %v154 = vmul.f32 %v146, 0.70710677
  %v155 = vmul.f32 %v149, 0.70710677
  %v156 = verf.f32.pop %v154
  %v157 = verf.f32.pop %v155
  %v158 = vadd.f32 %v156, 1.0
  %v159 = vadd.f32 %v157, 1.0
  %v160 = vmul.f32 %v152, %v158
  %v161 = vmul.f32 %v153, %v159
  %v162 = vpack.c.bf16 %v161, %v160
  %v163 = vld [vmem:[%s5] sm:$0xf]
  %v164 = vld [vmem:[%s5 + $0x4] sm:$0xf]
  %v165 = vld [vmem:[%s5 + $0x8] sm:$0xf]
  %v166 = vld [vmem:[%s5 + $0xc] sm:$0xf]
  %v167 = vld [vmem:[%s5 + $0x10] sm:$0xf]
  %v168 = vld [vmem:[%s5 + $0x14] sm:$0xf]
  %v169 = vld [vmem:[%s5 + $0x18] sm:$0xf]
  %v170 = vld [vmem:[%s5 + $0x1c] sm:$0xf]
  %v171 = vld [vmem:[%s5 + $0x20] sm:$0xf]
  %v172 = vld [vmem:[%s5 + $0x24] sm:$0xf]
  %v173 = vld [vmem:[%s5 + $0x28] sm:$0xf]
  %v174 = vld [vmem:[%s5 + $0x2c] sm:$0xf]
  %v175 = vld [vmem:[%s5 + $0x30] sm:$0xf]
  %v176 = vld [vmem:[%s5 + $0x34] sm:$0xf]
  %v177 = vld [vmem:[%s5 + $0x38] sm:$0xf]
  %v178 = vld [vmem:[%s5 + $0x3c] sm:$0xf]
  %v195 = vunpack.c.l.b16 %v163
  %v196 = vunpack.c.l.b16 %v164
  %v197 = vunpack.c.l.b16 %v165
  %v198 = vunpack.c.l.b16 %v166
  %v199 = vunpack.c.l.b16 %v167
  %v200 = vunpack.c.l.b16 %v168
  %v201 = vunpack.c.l.b16 %v169
  %v202 = vunpack.c.l.b16 %v170
  %v203 = vunpack.c.l.b16 %v171
  %v204 = vunpack.c.l.b16 %v172
  %v205 = vunpack.c.l.b16 %v173
  %v206 = vunpack.c.l.b16 %v174
  %v207 = vunpack.c.l.b16 %v175
  %v208 = vunpack.c.l.b16 %v176
  %v209 = vunpack.c.l.b16 %v177
  %v210 = vunpack.c.l.b16 %v178
  %v211 = vpack.c.b16 %v196, %v195
  %v212 = vpack.c.b16 %v198, %v197
  %v213 = vpack.c.b16 %v200, %v199
  %v214 = vpack.c.b16 %v202, %v201
  %v215 = vpack.c.b16 %v204, %v203
  %v216 = vpack.c.b16 %v206, %v205
  %v217 = vpack.c.b16 %v208, %v207
  %v218 = vpack.c.b16 %v210, %v209
  %227 = vmatprep.subr.bf16.mxu0 0
  %228 = vmatpush1.bf16.msra.mxu0 %v211
  %229 = vmatprep.subr.bf16.mxu0 0
  %230 = vmatpush1.bf16.msra.mxu0 %v212
  %231 = vmatprep.subr.bf16.mxu0 0
  %232 = vmatpush1.bf16.msra.mxu0 %v213
  %233 = vmatprep.subr.bf16.mxu0 0
  %234 = vmatpush1.bf16.msra.mxu0 %v214
  %235 = vmatprep.subr.bf16.mxu0 0
  %236 = vmatpush1.bf16.msra.mxu0 %v215
  %237 = vmatprep.subr.bf16.mxu0 0
  %238 = vmatpush1.bf16.msra.mxu0 %v216
  %239 = vmatprep.subr.bf16.mxu0 0
  %240 = vmatpush1.bf16.msra.mxu0 %v217
  %241 = vmatprep.subr.bf16.mxu0 0
  %242 = vmatpush1.bf16.msra.mxu0 %v218
  %243 = vmatprep.subr.bf16.mxu0 0
  %244 = vmatpush1.bf16.msra.mxu0 0
  %245 = vmatprep.subr.bf16.mxu0 0
  %246 = vmatpush1.bf16.msra.mxu0 0
  %247 = vmatprep.subr.bf16.mxu0 0
  %248 = vmatpush1.bf16.msra.mxu0 0
  %249 = vmatprep.subr.bf16.mxu0 0
  %250 = vmatpush1.bf16.msra.mxu0 0
  %251 = vmatprep.subr.bf16.mxu0 0
  %252 = vmatpush1.bf16.msra.mxu0 0
  %253 = vmatprep.subr.bf16.mxu0 0
  %254 = vmatpush1.bf16.msra.mxu0 0
  %255 = vmatprep.subr.bf16.mxu0 0
  %256 = vmatpush1.bf16.msra.mxu0 0
  %257 = vmatprep.subr.bf16.mxu0 0
  %258 = vmatpush1.bf16.msra.mxu0 0
  %259 = vmatprep.mubr.bf16.mxu0 0
  %260 = vmatmul.mubr.bf16.gmra.mrb[0].mxu0 %v162
  %v261 = vpop.f32.mrb[0].mxu0
  %v262 = vadd.f32 0.0, %v261
  %v263 = vpop.f32.mrb[0].mxu0
  %v264 = vpop.f32.mrb[0].mxu0
  %v265 = vadd.f32 0.0, %v264
  %v266 = vpop.f32.mrb[0].mxu0
  %267 = vdwg.mxu0
  %v268 = vadd.f32 %v83, %v262
  %v269 = vadd.f32 %v84, %v265
  %270 = vst.msk [vmem:[%s7] sm:$0xff] %vm31, %v268
  %271 = vst.msk [vmem:[%s7 + $0x8] sm:$0xff] %vm31, %v269
  // Predicated region
  $region30: #{vit_forward.14} parent=0 // pred_check
    _
  $region31: #{vit_forward.14} parent=0 // pred_check_branch
    %273 = sbr.rel (0) target = $region33
  $region32: #{vit_forward.14} parent=0 // pred_region
    _
  $region33: #{vit_forward.14} parent=0 // pred_fallthru
    _
  // Predicated region
  $region34: #{vit_forward.14} parent=0 // pred_check
    _
  $region35: #{vit_forward.14} parent=0 // pred_check_branch
    %275 = sbr.rel (0) target = $region37
  $region36: #{vit_forward.14} parent=0 // pred_region
    _
  $region37: #{vit_forward.14} parent=0 // pred_fallthru
    _

</llo_original>
